<compile_context>
chip_gen: v5e
topology: v5e:2x2
jax: 0.10.0
libtpu: 0.0.40
codegen_flags: <defaults>
</compile_context>

<pallas_src>
import functools
import numpy as np
import jax
import jax.numpy as jnp
from jax import lax
from jax.experimental import pallas as pl
from jax.experimental.pallas import tpu as pltpu

EPS = 1e-5  # nn.LayerNorm default eps


def _erf(z):
    # Abramowitz & Stegun 7.1.26 (|abs err| <= 1.5e-7): only exp/mul/where.
    a1, a2, a3, a4, a5 = (0.254829592, -0.284496736, 1.421413741,
                          -1.453152027, 1.061405429)
    p = 0.3275911
    az = jnp.abs(z)
    t = 1.0 / (1.0 + p * az)
    poly = ((((a5 * t + a4) * t + a3) * t + a2) * t + a1) * t
    y = 1.0 - poly * jnp.exp(-az * az)
    return jnp.where(z >= 0, y, -y)


def _gelu_exact(x):
    # matches torch.nn.GELU() (erf formulation)
    return 0.5 * x * (1.0 + _erf(x * (1.0 / np.sqrt(2.0))))


def _layer_norm(z, gamma, beta):
    # fused stats: sum and sum-of-squares in one pass, rsqrt on the EUP slot
    c = z.shape[-1]
    s1 = jnp.sum(z, axis=-1, keepdims=True)
    s2 = jnp.sum(z * z, axis=-1, keepdims=True)
    mu = s1 * (1.0 / c)
    var = s2 * (1.0 / c) - mu * mu
    return (z - mu) * lax.rsqrt(var + EPS) * gamma + beta


def mome_alt_block_kernel(num_heads, tile_n,
                          x_ref,
                          wq_ref, wkv_ref, wp_ref, bp_ref,
                          g1_ref, be1_ref,
                          w1_ref, b1_ref, w2_ref, b2_ref,
                          g2_ref, be2_ref,
                          out_ref, t_ref,
                          kv_sc, attn_sc):
    f32 = jnp.float32
    bf16 = jnp.bfloat16
    N, C = x_ref.shape[1], x_ref.shape[2]
    T = tile_n
    dh = C // num_heads
    scale = dh ** -0.5                      # qk_scale = head_dim ** -0.5

    n = pl.program_id(1)

    # ---- K|V projections: one fused MXU matmul per batch element (first
    # query tile of the sequential axis), cached in VMEM scratch and reused
    # for every query tile of this batch element. --------------------------
    @pl.when(n == 0)
    def _():
        xkv = x_ref[0].astype(bf16)                                  # (N, C)
        kv_sc[...] = jnp.dot(xkv, wkv_ref[...],
                             preferred_element_type=f32).astype(bf16)

    # ---- query tile, sliced from the resident full-sequence block ---------
    row0 = pl.multiple_of(n * T, T)
    x = x_ref[0, pl.ds(row0, T), :].astype(f32)                       # (T, C)
    xb = x.astype(bf16)

    # ---- AltAttention (softmax scale folded into q: T*C muls, not H*T*N) --
    q = jnp.dot(xb, wq_ref[...], preferred_element_type=f32) * scale
    qb = q.astype(bf16)

    dn_qk = (((1,), (1,)), ((), ()))        # contract last dims: no k.T
    for h in range(num_heads):              # static unroll over heads
        lo, hi = h * dh, (h + 1) * dh
        s = lax.dot_general(qb[:, lo:hi], kv_sc[:, lo:hi], dn_qk,
                            preferred_element_type=f32)              # (T, N)
        s = s - jnp.max(s, axis=-1, keepdims=True)
        p = jnp.exp(s)
        p = p * pl.reciprocal(jnp.sum(p, axis=-1, keepdims=True), approx=True)
        # head output written straight into its lane slice (no concatenate)
        attn_sc[:, lo:hi] = jnp.dot(p.astype(bf16), kv_sc[:, C + lo:C + hi],
                                    preferred_element_type=f32)      # (T, dh)

    attn = jnp.dot(attn_sc[...].astype(bf16), wp_ref[...],
                   preferred_element_type=f32) + bp_ref[...]

    # ---- residual + norm1 (drop_path = Identity at rate 0) ----------------
    r = _layer_norm(x + attn, g1_ref[...], be1_ref[...])

    # ---- MLP (exact GELU) --------------------------------------------------
    h1 = jnp.dot(r.astype(bf16), w1_ref[...],
                 preferred_element_type=f32) + b1_ref[...]
    h1 = _gelu_exact(h1)
    t = jnp.dot(h1.astype(bf16), w2_ref[...],
                preferred_element_type=f32) + b2_ref[...]

    # ---- residual + norm2 --------------------------------------------------
    y = _layer_norm(r + t, g2_ref[...], be2_ref[...])

    out_ref[0] = y.astype(out_ref.dtype)
    t_ref[0] = t.astype(t_ref.dtype)


def mome_alt_block(x, params, num_heads, tile_n=128):
    B, N, C = x.shape
    Hm = params["w1"].shape[1]
    assert C % num_heads == 0
    T = min(tile_n, N)
    assert N % T == 0, "sequence length must be a multiple of the tile size"
    NT = N // T

    bf16 = jnp.bfloat16
    f32 = jnp.float32
    # bf16 weights: MXU-native operands + half the VMEM residency; K and V
    # projection weights stacked for one fused matmul.
    wq = params["wq"].astype(bf16)
    wkv = jnp.concatenate([params["wk"], params["wv"]], axis=1).astype(bf16)
    wp = params["wp"].astype(bf16)
    w1 = params["w1"].astype(bf16)
    w2 = params["w2"].astype(bf16)
    bp = params["bp"].astype(f32)
    b1 = params["b1"].astype(f32)
    b2 = params["b2"].astype(f32)
    g1 = params["g1"].astype(f32)
    be1 = params["be1"].astype(f32)
    g2 = params["g2"].astype(f32)
    be2 = params["be2"].astype(f32)

    def w_spec(shape):
        # constant-index weight block (resident across the whole grid)
        return pl.BlockSpec(shape, lambda b, n: (0, 0))

    in_specs = [
        pl.BlockSpec((1, N, C), lambda b, n: (b, 0, 0)),   # x (full seq/batch)
        w_spec((C, C)), w_spec((C, 2 * C)),                # wq, [wk|wv]
        w_spec((C, C)), w_spec((1, C)),                    # wproj, bproj
        w_spec((1, C)), w_spec((1, C)),                    # norm1 gamma, beta
        w_spec((C, Hm)), w_spec((1, Hm)),                  # fc1 w, b
        w_spec((Hm, C)), w_spec((1, C)),                   # fc2 w, b
        w_spec((1, C)), w_spec((1, C)),                    # norm2 gamma, beta
    ]
    out_specs = (pl.BlockSpec((1, T, C), lambda b, n: (b, n, 0)),
                 pl.BlockSpec((1, T, C), lambda b, n: (b, n, 0)))
    out_shape = (jax.ShapeDtypeStruct((B, N, C), x.dtype),
                 jax.ShapeDtypeStruct((B, N, C), x.dtype))

    # Advisory cost estimate so XLA schedules the surrounding graph sensibly.
    itemsize = jnp.dtype(x.dtype).itemsize
    flops = int(2 * B * N * (4 * C * C + 2 * N * C + 2 * C * Hm))
    transcendentals = int(B * N * (N + Hm))
    bytes_accessed = int(3 * B * N * C * itemsize            # x + 2 outputs
                         + (4 * C * C + 2 * C * Hm) * 2      # bf16 weights
                         + (5 * C + Hm) * 4)                 # f32 vector params

    fn = pl.pallas_call(
        functools.partial(mome_alt_block_kernel, num_heads, T),
        grid=(B, NT),
        in_specs=in_specs,
        out_specs=out_specs,
        out_shape=out_shape,
        scratch_shapes=[
            pltpu.VMEM((N, 2 * C), bf16),  # cached K|V projections (per batch)
            pltpu.VMEM((T, C), f32),       # per-head attention output slab
        ],
        compiler_params=pltpu.CompilerParams(
            # batch axis sharded across cores (megacore); sequence-tile axis is
            # sequential so the cached K|V scratch is valid across it.
            dimension_semantics=("parallel", "arbitrary"),
            vmem_limit_bytes=48 * 1024 * 1024,
        ),
        cost_estimate=pl.CostEstimate(flops=flops,
                                      transcendentals=transcendentals,
                                      bytes_accessed=bytes_accessed),
    )
    return fn(x, wq, wkv, wp, bp,
              g1, be1,
              w1, b1, w2, b2,
              g2, be2)


# ------------------------- pure-JAX reference -------------------------------
def reference(x, params, num_heads):
    B, N, C = x.shape
    dh = C // num_heads
    scale = dh ** -0.5
    q = (x @ params["wq"]).reshape(B, N, num_heads, dh).transpose(0, 2, 1, 3)
    k = (x @ params["wk"]).reshape(B, N, num_heads, dh).transpose(0, 2, 1, 3)
    v = (x @ params["wv"]).reshape(B, N, num_heads, dh).transpose(0, 2, 1, 3)
    s = jnp.einsum("bhnd,bhmd->bhnm", q, k) * scale
    p = jax.nn.softmax(s, axis=-1)
    a = jnp.einsum("bhnm,bhmd->bhnd", p, v).transpose(0, 2, 1, 3).reshape(B, N, C)
    a = a @ params["wp"] + params["bp"][0]
    x1 = x + a

    def ln(z, g, b):
        mu = z.mean(-1, keepdims=True)
        var = ((z - mu) ** 2).mean(-1, keepdims=True)
        return (z - mu) / jnp.sqrt(var + EPS) * g + b

    r = ln(x1, params["g1"][0], params["be1"][0])
    h = jax.nn.gelu(r @ params["w1"] + params["b1"][0], approximate=False)
    t = h @ params["w2"] + params["b2"][0]
    y = ln(r + t, params["g2"][0], params["be2"][0])
    return y, t


if __name__ == "__main__":
    # Small shapes consistent with the module: batch=2, seq=16, dim=128,
    # num_heads=4 (head_dim=32), mlp_ratio=4 -> hidden=512.  C=128 keeps the
    # output stores lane-dense; tile_n=8 gives 2 sequence tiles per batch
    # element, exercising the cached-K|V scratch path.
    B, N, C, H = 2, 16, 128, 4
    Hm = int(C * 4.0)

    key = jax.random.PRNGKey(0)
    keys = jax.random.split(key, 16)
    f32 = jnp.float32

    x = jax.random.normal(keys[0], (B, N, C), dtype=f32)

    # PyTorch nn.Linear uses W of shape (out,in) with y = x @ W.T + b; here we
    # directly materialize the transposed (in,out) weights.
    params = {
        "wq":  0.05 * jax.random.normal(keys[1], (C, C), f32),
        "wk":  0.05 * jax.random.normal(keys[2], (C, C), f32),
        "wv":  0.05 * jax.random.normal(keys[3], (C, C), f32),
        "wp":  0.05 * jax.random.normal(keys[4], (C, C), f32),
        "bp":  0.02 * jax.random.normal(keys[5], (1, C), f32),
        "g1":  1.0 + 0.05 * jax.random.normal(keys[6], (1, C), f32),
        "be1": 0.05 * jax.random.normal(keys[7], (1, C), f32),
        "w1":  0.05 * jax.random.normal(keys[8], (C, Hm), f32),
        "b1":  0.02 * jax.random.normal(keys[9], (1, Hm), f32),
        "w2":  0.05 * jax.random.normal(keys[10], (Hm, C), f32),
        "b2":  0.02 * jax.random.normal(keys[11], (1, C), f32),
        "g2":  1.0 + 0.05 * jax.random.normal(keys[12], (1, C), f32),
        "be2": 0.05 * jax.random.normal(keys[13], (1, C), f32),
    }

    out, t = mome_alt_block(x, params, H, tile_n=8)
    jax.block_until_ready((out, t))

    out_ref, t_ref = reference(x, params, H)
    # bf16 MXU operands (f32 accumulation) vs. the f32 reference -> relaxed tol.
    np.testing.assert_allclose(np.asarray(out), np.asarray(out_ref),
                               rtol=5e-2, atol=5e-2)
    np.testing.assert_allclose(np.asarray(t), np.asarray(t_ref),
                               rtol=5e-2, atol=5e-2)

    print("KERNEL_OK")
</pallas_src>

<mosaic_0001>
module attributes {stable_mosaic.version = 11 : i64} {
  func.func @mome_alt_block_kernel(%arg0: i32, %arg1: i32, %arg2: memref<1x16x128xf32, #tpu.memory_space<vmem>>, %arg3: memref<128x128xbf16, #tpu.memory_space<vmem>>, %arg4: memref<128x256xbf16, #tpu.memory_space<vmem>>, %arg5: memref<128x128xbf16, #tpu.memory_space<vmem>>, %arg6: memref<1x128xf32, #tpu.memory_space<vmem>>, %arg7: memref<1x128xf32, #tpu.memory_space<vmem>>, %arg8: memref<1x128xf32, #tpu.memory_space<vmem>>, %arg9: memref<128x512xbf16, #tpu.memory_space<vmem>>, %arg10: memref<1x512xf32, #tpu.memory_space<vmem>>, %arg11: memref<512x128xbf16, #tpu.memory_space<vmem>>, %arg12: memref<1x128xf32, #tpu.memory_space<vmem>>, %arg13: memref<1x128xf32, #tpu.memory_space<vmem>>, %arg14: memref<1x128xf32, #tpu.memory_space<vmem>>, %arg15: memref<1x8x128xf32, #tpu.memory_space<vmem>>, %arg16: memref<1x8x128xf32, #tpu.memory_space<vmem>>, %arg17: memref<16x256xbf16, #tpu.memory_space<vmem>>, %arg18: memref<8x128xf32, #tpu.memory_space<vmem>>) attributes {dimension_semantics = [#tpu.dimension_semantics<parallel>, #tpu.dimension_semantics<arbitrary>], iteration_bounds = array<i64: 2, 2>, scalar_prefetch = 0 : i64, scratch_operands = 2 : i64, tpu.core_type = #tpu.core_type<tc>, window_params = [{transform_indices = @transform_0, window_bounds = array<i64: 1, 16, 128>}, {pipeline_mode = #tpu.pipeline_mode<synchronous>, transform_indices = @transform_1, window_bounds = array<i64: 128, 128>}, {pipeline_mode = #tpu.pipeline_mode<synchronous>, transform_indices = @transform_2, window_bounds = array<i64: 128, 256>}, {pipeline_mode = #tpu.pipeline_mode<synchronous>, transform_indices = @transform_3, window_bounds = array<i64: 128, 128>}, {pipeline_mode = #tpu.pipeline_mode<synchronous>, transform_indices = @transform_4, window_bounds = array<i64: 1, 128>}, {pipeline_mode = #tpu.pipeline_mode<synchronous>, transform_indices = @transform_5, window_bounds = array<i64: 1, 128>}, {pipeline_mode = #tpu.pipeline_mode<synchronous>, transform_indices = @transform_6, window_bounds = array<i64: 1, 128>}, {pipeline_mode = #tpu.pipeline_mode<synchronous>, transform_indices = @transform_7, window_bounds = array<i64: 128, 512>}, {pipeline_mode = #tpu.pipeline_mode<synchronous>, transform_indices = @transform_8, window_bounds = array<i64: 1, 512>}, {pipeline_mode = #tpu.pipeline_mode<synchronous>, transform_indices = @transform_9, window_bounds = array<i64: 512, 128>}, {pipeline_mode = #tpu.pipeline_mode<synchronous>, transform_indices = @transform_10, window_bounds = array<i64: 1, 128>}, {pipeline_mode = #tpu.pipeline_mode<synchronous>, transform_indices = @transform_11, window_bounds = array<i64: 1, 128>}, {pipeline_mode = #tpu.pipeline_mode<synchronous>, transform_indices = @transform_12, window_bounds = array<i64: 1, 128>}, {transform_indices = @transform_13, window_bounds = array<i64: 1, 8, 128>}, {transform_indices = @transform_14, window_bounds = array<i64: 1, 8, 128>}]} {
    %c0_i32 = arith.constant 0 : i32
    %0 = arith.cmpi eq, %arg1, %c0_i32 : i32
    %1 = arith.extui %0 : i1 to i32
    %c0_i32_0 = arith.constant 0 : i32
    %2 = arith.cmpi ne, %1, %c0_i32_0 : i32
    scf.if %2 {
      %c0_94 = arith.constant 0 : index
      %c0_95 = arith.constant 0 : index
      %c0_96 = arith.constant 0 : index
      %197 = vector.load %arg2[%c0_94, %c0_95, %c0_96] : memref<1x16x128xf32, #tpu.memory_space<vmem>>, vector<1x16x128xf32>
      %198 = vector.shape_cast %197 : vector<1x16x128xf32> to vector<16x128xf32>
      %199 = arith.truncf %198 : vector<16x128xf32> to vector<16x128xbf16>
      %c0_97 = arith.constant 0 : index
      %c0_98 = arith.constant 0 : index
      %200 = vector.load %arg4[%c0_97, %c0_98] : memref<128x256xbf16, #tpu.memory_space<vmem>>, vector<128x256xbf16>
      %cst_99 = arith.constant dense<0.000000e+00> : vector<16x256xf32>
      %201 = tpu.matmul %199, %200, %cst_99 {dimension_numbers = #tpu.dot_dimension_numbers<[1], [0], [0], [1], [0, 0, 1, 1], [], []>} : vector<16x128xbf16>, vector<128x256xbf16>, vector<16x256xf32> -> vector<16x256xf32>
      %202 = arith.truncf %201 : vector<16x256xf32> to vector<16x256xbf16>
      %c0_100 = arith.constant 0 : index
      %c0_101 = arith.constant 0 : index
      %203 = vector.load %arg17[%c0_100, %c0_101] : memref<16x256xbf16, #tpu.memory_space<vmem>>, vector<16x256xbf16>
      tpu.vector_store %arg17[%c0_100, %c0_101], %202 {strides = array<i32>} : memref<16x256xbf16, #tpu.memory_space<vmem>>, vector<16x256xbf16>,
    } else {
    }
    %c8_i32 = arith.constant 8 : i32
    %3 = arith.muli %arg1, %c8_i32 : i32
    %4 = tpu.assume_multiple %3, 8 : i32
    %c0 = arith.constant 0 : index
    %5 = arith.index_cast %4 : i32 to index
    %c0_1 = arith.constant 0 : index
    %6 = vector.load %arg2[%c0, %5, %c0_1] : memref<1x16x128xf32, #tpu.memory_space<vmem>>, vector<1x8x128xf32>
    %7 = vector.shape_cast %6 : vector<1x8x128xf32> to vector<8x128xf32>
    %8 = arith.truncf %7 : vector<8x128xf32> to vector<8x128xbf16>
    %c0_2 = arith.constant 0 : index
    %c0_3 = arith.constant 0 : index
    %9 = vector.load %arg3[%c0_2, %c0_3] : memref<128x128xbf16, #tpu.memory_space<vmem>>, vector<128x128xbf16>
    %cst = arith.constant dense<0.000000e+00> : vector<8x128xf32>
    %10 = tpu.matmul %8, %9, %cst {dimension_numbers = #tpu.dot_dimension_numbers<[1], [0], [0], [1], [0, 0, 1, 1], [], []>} : vector<8x128xbf16>, vector<128x128xbf16>, vector<8x128xf32> -> vector<8x128xf32>
    %cst_4 = arith.constant 0.176776692 : f32
    %11 = vector.broadcast %cst_4 : f32 to vector<8x128xf32>
    %12 = arith.mulf %10, %11 : vector<8x128xf32>
    %13 = arith.truncf %12 : vector<8x128xf32> to vector<8x128xbf16>
    %14 = vector.extract_strided_slice %13 {offsets = [0, 0], sizes = [8, 32], strides = [1, 1]} : vector<8x128xbf16> to vector<8x32xbf16>
    %c0_5 = arith.constant 0 : index
    %c0_6 = arith.constant 0 : index
    %15 = vector.load %arg17[%c0_5, %c0_6] : memref<16x256xbf16, #tpu.memory_space<vmem>>, vector<16x32xbf16>
    %cst_7 = arith.constant dense<0.000000e+00> : vector<8x16xf32>
    %16 = tpu.matmul %14, %15, %cst_7 {dimension_numbers = #tpu.dot_dimension_numbers<[1], [1], [0], [0], [0, 0, 1, 0], [], []>} : vector<8x32xbf16>, vector<16x32xbf16>, vector<8x16xf32> -> vector<8x16xf32>
    %cst_8 = arith.constant dense<0xFF800000> : vector<8xf32>
    %17 = vector.multi_reduction <maximumf>, %16, %cst_8 [1] : vector<8x16xf32> to vector<8xf32>
    %18 = vector.shape_cast %17 : vector<8xf32> to vector<8x1xf32>
    %19 = vector.broadcast %18 : vector<8x1xf32> to vector<8x16xf32>
    %20 = arith.subf %16, %19 : vector<8x16xf32>
    %21 = math.exp %20 : vector<8x16xf32>
    %cst_9 = arith.constant dense<0.000000e+00> : vector<8xf32>
    %22 = vector.multi_reduction <add>, %21, %cst_9 [1] : vector<8x16xf32> to vector<8xf32>
    %23 = vector.shape_cast %22 : vector<8xf32> to vector<8x1xf32>
    %24 = tpu.reciprocal %23 {approx = true} : vector<8x1xf32> -> vector<8x1xf32>
    %25 = vector.broadcast %24 : vector<8x1xf32> to vector<8x16xf32>
    %26 = arith.mulf %21, %25 : vector<8x16xf32>
    %27 = arith.truncf %26 : vector<8x16xf32> to vector<8x16xbf16>
    %c0_10 = arith.constant 0 : index
    %c128 = arith.constant 128 : index
    %28 = vector.load %arg17[%c0_10, %c128] : memref<16x256xbf16, #tpu.memory_space<vmem>>, vector<16x32xbf16>
    %cst_11 = arith.constant dense<0.000000e+00> : vector<8x32xf32>
    %29 = tpu.matmul %27, %28, %cst_11 {dimension_numbers = #tpu.dot_dimension_numbers<[1], [0], [0], [1], [0, 0, 1, 1], [], []>} : vector<8x16xbf16>, vector<16x32xbf16>, vector<8x32xf32> -> vector<8x32xf32>
    %c0_12 = arith.constant 0 : index
    %c0_13 = arith.constant 0 : index
    %30 = vector.load %arg18[%c0_12, %c0_13] : memref<8x128xf32, #tpu.memory_space<vmem>>, vector<8x32xf32>
    tpu.vector_store %arg18[%c0_12, %c0_13], %29 {strides = array<i32>} : memref<8x128xf32, #tpu.memory_space<vmem>>, vector<8x32xf32>,
    %31 = vector.extract_strided_slice %13 {offsets = [0, 32], sizes = [8, 32], strides = [1, 1]} : vector<8x128xbf16> to vector<8x32xbf16>
    %c0_14 = arith.constant 0 : index
    %c32 = arith.constant 32 : index
    %32 = vector.load %arg17[%c0_14, %c32] : memref<16x256xbf16, #tpu.memory_space<vmem>>, vector<16x32xbf16>
    %cst_15 = arith.constant dense<0.000000e+00> : vector<8x16xf32>
    %33 = tpu.matmul %31, %32, %cst_15 {dimension_numbers = #tpu.dot_dimension_numbers<[1], [1], [0], [0], [0, 0, 1, 0], [], []>} : vector<8x32xbf16>, vector<16x32xbf16>, vector<8x16xf32> -> vector<8x16xf32>
    %cst_16 = arith.constant dense<0xFF800000> : vector<8xf32>
    %34 = vector.multi_reduction <maximumf>, %33, %cst_16 [1] : vector<8x16xf32> to vector<8xf32>
    %35 = vector.shape_cast %34 : vector<8xf32> to vector<8x1xf32>
    %36 = vector.broadcast %35 : vector<8x1xf32> to vector<8x16xf32>
    %37 = arith.subf %33, %36 : vector<8x16xf32>
    %38 = math.exp %37 : vector<8x16xf32>
    %cst_17 = arith.constant dense<0.000000e+00> : vector<8xf32>
    %39 = vector.multi_reduction <add>, %38, %cst_17 [1] : vector<8x16xf32> to vector<8xf32>
    %40 = vector.shape_cast %39 : vector<8xf32> to vector<8x1xf32>
    %41 = tpu.reciprocal %40 {approx = true} : vector<8x1xf32> -> vector<8x1xf32>
    %42 = vector.broadcast %41 : vector<8x1xf32> to vector<8x16xf32>
    %43 = arith.mulf %38, %42 : vector<8x16xf32>
    %44 = arith.truncf %43 : vector<8x16xf32> to vector<8x16xbf16>
    %c0_18 = arith.constant 0 : index
    %c160 = arith.constant 160 : index
    %45 = vector.load %arg17[%c0_18, %c160] : memref<16x256xbf16, #tpu.memory_space<vmem>>, vector<16x32xbf16>
    %cst_19 = arith.constant dense<0.000000e+00> : vector<8x32xf32>
    %46 = tpu.matmul %44, %45, %cst_19 {dimension_numbers = #tpu.dot_dimension_numbers<[1], [0], [0], [1], [0, 0, 1, 1], [], []>} : vector<8x16xbf16>, vector<16x32xbf16>, vector<8x32xf32> -> vector<8x32xf32>
    %c0_20 = arith.constant 0 : index
    %c32_21 = arith.constant 32 : index
    %47 = vector.load %arg18[%c0_20, %c32_21] : memref<8x128xf32, #tpu.memory_space<vmem>>, vector<8x32xf32>
    tpu.vector_store %arg18[%c0_20, %c32_21], %46 {strides = array<i32>} : memref<8x128xf32, #tpu.memory_space<vmem>>, vector<8x32xf32>,
    %48 = vector.extract_strided_slice %13 {offsets = [0, 64], sizes = [8, 32], strides = [1, 1]} : vector<8x128xbf16> to vector<8x32xbf16>
    %c0_22 = arith.constant 0 : index
    %c64 = arith.constant 64 : index
    %49 = vector.load %arg17[%c0_22, %c64] : memref<16x256xbf16, #tpu.memory_space<vmem>>, vector<16x32xbf16>
    %cst_23 = arith.constant dense<0.000000e+00> : vector<8x16xf32>
    %50 = tpu.matmul %48, %49, %cst_23 {dimension_numbers = #tpu.dot_dimension_numbers<[1], [1], [0], [0], [0, 0, 1, 0], [], []>} : vector<8x32xbf16>, vector<16x32xbf16>, vector<8x16xf32> -> vector<8x16xf32>
    %cst_24 = arith.constant dense<0xFF800000> : vector<8xf32>
    %51 = vector.multi_reduction <maximumf>, %50, %cst_24 [1] : vector<8x16xf32> to vector<8xf32>
    %52 = vector.shape_cast %51 : vector<8xf32> to vector<8x1xf32>
    %53 = vector.broadcast %52 : vector<8x1xf32> to vector<8x16xf32>
    %54 = arith.subf %50, %53 : vector<8x16xf32>
    %55 = math.exp %54 : vector<8x16xf32>
    %cst_25 = arith.constant dense<0.000000e+00> : vector<8xf32>
    %56 = vector.multi_reduction <add>, %55, %cst_25 [1] : vector<8x16xf32> to vector<8xf32>
    %57 = vector.shape_cast %56 : vector<8xf32> to vector<8x1xf32>
    %58 = tpu.reciprocal %57 {approx = true} : vector<8x1xf32> -> vector<8x1xf32>
    %59 = vector.broadcast %58 : vector<8x1xf32> to vector<8x16xf32>
    %60 = arith.mulf %55, %59 : vector<8x16xf32>
    %61 = arith.truncf %60 : vector<8x16xf32> to vector<8x16xbf16>
    %c0_26 = arith.constant 0 : index
    %c192 = arith.constant 192 : index
    %62 = vector.load %arg17[%c0_26, %c192] : memref<16x256xbf16, #tpu.memory_space<vmem>>, vector<16x32xbf16>
    %cst_27 = arith.constant dense<0.000000e+00> : vector<8x32xf32>
    %63 = tpu.matmul %61, %62, %cst_27 {dimension_numbers = #tpu.dot_dimension_numbers<[1], [0], [0], [1], [0, 0, 1, 1], [], []>} : vector<8x16xbf16>, vector<16x32xbf16>, vector<8x32xf32> -> vector<8x32xf32>
    %c0_28 = arith.constant 0 : index
    %c64_29 = arith.constant 64 : index
    %64 = vector.load %arg18[%c0_28, %c64_29] : memref<8x128xf32, #tpu.memory_space<vmem>>, vector<8x32xf32>
    tpu.vector_store %arg18[%c0_28, %c64_29], %63 {strides = array<i32>} : memref<8x128xf32, #tpu.memory_space<vmem>>, vector<8x32xf32>,
    %65 = vector.extract_strided_slice %13 {offsets = [0, 96], sizes = [8, 32], strides = [1, 1]} : vector<8x128xbf16> to vector<8x32xbf16>
    %c0_30 = arith.constant 0 : index
    %c96 = arith.constant 96 : index
    %66 = vector.load %arg17[%c0_30, %c96] : memref<16x256xbf16, #tpu.memory_space<vmem>>, vector<16x32xbf16>
    %cst_31 = arith.constant dense<0.000000e+00> : vector<8x16xf32>
    %67 = tpu.matmul %65, %66, %cst_31 {dimension_numbers = #tpu.dot_dimension_numbers<[1], [1], [0], [0], [0, 0, 1, 0], [], []>} : vector<8x32xbf16>, vector<16x32xbf16>, vector<8x16xf32> -> vector<8x16xf32>
    %cst_32 = arith.constant dense<0xFF800000> : vector<8xf32>
    %68 = vector.multi_reduction <maximumf>, %67, %cst_32 [1] : vector<8x16xf32> to vector<8xf32>
    %69 = vector.shape_cast %68 : vector<8xf32> to vector<8x1xf32>
    %70 = vector.broadcast %69 : vector<8x1xf32> to vector<8x16xf32>
    %71 = arith.subf %67, %70 : vector<8x16xf32>
    %72 = math.exp %71 : vector<8x16xf32>
    %cst_33 = arith.constant dense<0.000000e+00> : vector<8xf32>
    %73 = vector.multi_reduction <add>, %72, %cst_33 [1] : vector<8x16xf32> to vector<8xf32>
    %74 = vector.shape_cast %73 : vector<8xf32> to vector<8x1xf32>
    %75 = tpu.reciprocal %74 {approx = true} : vector<8x1xf32> -> vector<8x1xf32>
    %76 = vector.broadcast %75 : vector<8x1xf32> to vector<8x16xf32>
    %77 = arith.mulf %72, %76 : vector<8x16xf32>
    %78 = arith.truncf %77 : vector<8x16xf32> to vector<8x16xbf16>
    %c0_34 = arith.constant 0 : index
    %c224 = arith.constant 224 : index
    %79 = vector.load %arg17[%c0_34, %c224] : memref<16x256xbf16, #tpu.memory_space<vmem>>, vector<16x32xbf16>
    %cst_35 = arith.constant dense<0.000000e+00> : vector<8x32xf32>
    %80 = tpu.matmul %78, %79, %cst_35 {dimension_numbers = #tpu.dot_dimension_numbers<[1], [0], [0], [1], [0, 0, 1, 1], [], []>} : vector<8x16xbf16>, vector<16x32xbf16>, vector<8x32xf32> -> vector<8x32xf32>
    %c0_36 = arith.constant 0 : index
    %c96_37 = arith.constant 96 : index
    %81 = vector.load %arg18[%c0_36, %c96_37] : memref<8x128xf32, #tpu.memory_space<vmem>>, vector<8x32xf32>
    tpu.vector_store %arg18[%c0_36, %c96_37], %80 {strides = array<i32>} : memref<8x128xf32, #tpu.memory_space<vmem>>, vector<8x32xf32>,
    %c0_38 = arith.constant 0 : index
    %c0_39 = arith.constant 0 : index
    %82 = vector.load %arg18[%c0_38, %c0_39] : memref<8x128xf32, #tpu.memory_space<vmem>>, vector<8x128xf32>
    %83 = arith.truncf %82 : vector<8x128xf32> to vector<8x128xbf16>
    %c0_40 = arith.constant 0 : index
    %c0_41 = arith.constant 0 : index
    %84 = vector.load %arg5[%c0_40, %c0_41] : memref<128x128xbf16, #tpu.memory_space<vmem>>, vector<128x128xbf16>
    %cst_42 = arith.constant dense<0.000000e+00> : vector<8x128xf32>
    %85 = tpu.matmul %83, %84, %cst_42 {dimension_numbers = #tpu.dot_dimension_numbers<[1], [0], [0], [1], [0, 0, 1, 1], [], []>} : vector<8x128xbf16>, vector<128x128xbf16>, vector<8x128xf32> -> vector<8x128xf32>
    %c0_43 = arith.constant 0 : index
    %c0_44 = arith.constant 0 : index
    %86 = vector.load %arg6[%c0_43, %c0_44] : memref<1x128xf32, #tpu.memory_space<vmem>>, vector<1x128xf32>
    %87 = vector.broadcast %86 : vector<1x128xf32> to vector<8x128xf32>
    %88 = arith.addf %85, %87 : vector<8x128xf32>
    %89 = arith.addf %7, %88 : vector<8x128xf32>
    %c0_45 = arith.constant 0 : index
    %c0_46 = arith.constant 0 : index
    %90 = vector.load %arg7[%c0_45, %c0_46] : memref<1x128xf32, #tpu.memory_space<vmem>>, vector<1x128xf32>
    %c0_47 = arith.constant 0 : index
    %c0_48 = arith.constant 0 : index
    %91 = vector.load %arg8[%c0_47, %c0_48] : memref<1x128xf32, #tpu.memory_space<vmem>>, vector<1x128xf32>
    %cst_49 = arith.constant dense<0.000000e+00> : vector<8xf32>
    %92 = vector.multi_reduction <add>, %89, %cst_49 [1] : vector<8x128xf32> to vector<8xf32>
    %93 = vector.shape_cast %92 : vector<8xf32> to vector<8x1xf32>
    %94 = arith.mulf %89, %89 : vector<8x128xf32>
    %cst_50 = arith.constant dense<0.000000e+00> : vector<8xf32>
    %95 = vector.multi_reduction <add>, %94, %cst_50 [1] : vector<8x128xf32> to vector<8xf32>
    %96 = vector.shape_cast %95 : vector<8xf32> to vector<8x1xf32>
    %cst_51 = arith.constant 7.812500e-03 : f32
    %97 = vector.broadcast %cst_51 : f32 to vector<8x1xf32>
    %98 = arith.mulf %93, %97 : vector<8x1xf32>
    %cst_52 = arith.constant 7.812500e-03 : f32
    %99 = vector.broadcast %cst_52 : f32 to vector<8x1xf32>
    %100 = arith.mulf %96, %99 : vector<8x1xf32>
    %101 = arith.mulf %98, %98 : vector<8x1xf32>
    %102 = arith.subf %100, %101 : vector<8x1xf32>
    %103 = vector.broadcast %98 : vector<8x1xf32> to vector<8x128xf32>
    %104 = arith.subf %89, %103 : vector<8x128xf32>
    %cst_53 = arith.constant 9.99999974E-6 : f32
    %105 = vector.broadcast %cst_53 : f32 to vector<8x1xf32>
    %106 = arith.addf %102, %105 : vector<8x1xf32>
    %107 = math.rsqrt %106 : vector<8x1xf32>
    %108 = vector.broadcast %107 : vector<8x1xf32> to vector<8x128xf32>
    %109 = arith.mulf %104, %108 : vector<8x128xf32>
    %110 = vector.broadcast %90 : vector<1x128xf32> to vector<8x128xf32>
    %111 = arith.mulf %109, %110 : vector<8x128xf32>
    %112 = vector.broadcast %91 : vector<1x128xf32> to vector<8x128xf32>
    %113 = arith.addf %111, %112 : vector<8x128xf32>
    %114 = arith.truncf %113 : vector<8x128xf32> to vector<8x128xbf16>
    %c0_54 = arith.constant 0 : index
    %c0_55 = arith.constant 0 : index
    %115 = vector.load %arg9[%c0_54, %c0_55] : memref<128x512xbf16, #tpu.memory_space<vmem>>, vector<128x512xbf16>
    %cst_56 = arith.constant dense<0.000000e+00> : vector<8x512xf32>
    %116 = tpu.matmul %114, %115, %cst_56 {dimension_numbers = #tpu.dot_dimension_numbers<[1], [0], [0], [1], [0, 0, 1, 1], [], []>} : vector<8x128xbf16>, vector<128x512xbf16>, vector<8x512xf32> -> vector<8x512xf32>
    %c0_57 = arith.constant 0 : index
    %c0_58 = arith.constant 0 : index
    %117 = vector.load %arg10[%c0_57, %c0_58] : memref<1x512xf32, #tpu.memory_space<vmem>>, vector<1x512xf32>
    %118 = vector.broadcast %117 : vector<1x512xf32> to vector<8x512xf32>
    %119 = arith.addf %116, %118 : vector<8x512xf32>
    %cst_59 = arith.constant 5.000000e-01 : f32
    %120 = vector.broadcast %cst_59 : f32 to vector<8x512xf32>
    %121 = arith.mulf %120, %119 : vector<8x512xf32>
    %cst_60 = arith.constant 0.707106769 : f32
    %122 = vector.broadcast %cst_60 : f32 to vector<8x512xf32>
    %123 = arith.mulf %119, %122 : vector<8x512xf32>
    %124 = math.absf %123 : vector<8x512xf32>
    %cst_61 = arith.constant 0.327591091 : f32
    %125 = vector.broadcast %cst_61 : f32 to vector<8x512xf32>
    %126 = arith.mulf %125, %124 : vector<8x512xf32>
    %cst_62 = arith.constant 1.000000e+00 : f32
    %127 = vector.broadcast %cst_62 : f32 to vector<8x512xf32>
    %128 = arith.addf %127, %126 : vector<8x512xf32>
    %cst_63 = arith.constant 1.000000e+00 : f32
    %129 = vector.broadcast %cst_63 : f32 to vector<8x512xf32>
    %130 = arith.divf %129, %128 : vector<8x512xf32>
    %cst_64 = arith.constant 1.06140542 : f32
    %131 = vector.broadcast %cst_64 : f32 to vector<8x512xf32>
    %132 = arith.mulf %131, %130 : vector<8x512xf32>
    %cst_65 = arith.constant -1.45315206 : f32
    %133 = vector.broadcast %cst_65 : f32 to vector<8x512xf32>
    %134 = arith.addf %132, %133 : vector<8x512xf32>
    %135 = arith.mulf %134, %130 : vector<8x512xf32>
    %cst_66 = arith.constant 1.42141378 : f32
    %136 = vector.broadcast %cst_66 : f32 to vector<8x512xf32>
    %137 = arith.addf %135, %136 : vector<8x512xf32>
    %138 = arith.mulf %137, %130 : vector<8x512xf32>
    %cst_67 = arith.constant -0.284496725 : f32
    %139 = vector.broadcast %cst_67 : f32 to vector<8x512xf32>
    %140 = arith.addf %138, %139 : vector<8x512xf32>
    %141 = arith.mulf %140, %130 : vector<8x512xf32>
    %cst_68 = arith.constant 0.254829586 : f32
    %142 = vector.broadcast %cst_68 : f32 to vector<8x512xf32>
    %143 = arith.addf %141, %142 : vector<8x512xf32>
    %144 = arith.mulf %143, %130 : vector<8x512xf32>
    %cst_69 = arith.constant 0.000000e+00 : f32
    %145 = vector.broadcast %cst_69 : f32 to vector<8x512xf32>
    %146 = arith.subf %145, %124 : vector<8x512xf32>
    %147 = arith.mulf %146, %124 : vector<8x512xf32>
    %148 = math.exp %147 : vector<8x512xf32>
    %149 = arith.mulf %144, %148 : vector<8x512xf32>
    %cst_70 = arith.constant 1.000000e+00 : f32
    %150 = vector.broadcast %cst_70 : f32 to vector<8x512xf32>
    %151 = arith.subf %150, %149 : vector<8x512xf32>
    %cst_71 = arith.constant 0.000000e+00 : f32
    %152 = vector.broadcast %cst_71 : f32 to vector<8x512xf32>
    %153 = arith.cmpf oge, %123, %152 : vector<8x512xf32>
    %cst_72 = arith.constant 0.000000e+00 : f32
    %154 = vector.broadcast %cst_72 : f32 to vector<8x512xf32>
    %155 = arith.subf %154, %151 : vector<8x512xf32>
    %156 = arith.select %153, %151, %155 : vector<8x512xi1>, vector<8x512xf32>
    %cst_73 = arith.constant 1.000000e+00 : f32
    %157 = vector.broadcast %cst_73 : f32 to vector<8x512xf32>
    %158 = arith.addf %157, %156 : vector<8x512xf32>
    %159 = arith.mulf %121, %158 : vector<8x512xf32>
    %160 = arith.truncf %159 : vector<8x512xf32> to vector<8x512xbf16>
    %c0_74 = arith.constant 0 : index
    %c0_75 = arith.constant 0 : index
    %161 = vector.load %arg11[%c0_74, %c0_75] : memref<512x128xbf16, #tpu.memory_space<vmem>>, vector<512x128xbf16>
    %cst_76 = arith.constant dense<0.000000e+00> : vector<8x128xf32>
    %162 = tpu.matmul %160, %161, %cst_76 {dimension_numbers = #tpu.dot_dimension_numbers<[1], [0], [0], [1], [0, 0, 1, 1], [], []>} : vector<8x512xbf16>, vector<512x128xbf16>, vector<8x128xf32> -> vector<8x128xf32>
    %c0_77 = arith.constant 0 : index
    %c0_78 = arith.constant 0 : index
    %163 = vector.load %arg12[%c0_77, %c0_78] : memref<1x128xf32, #tpu.memory_space<vmem>>, vector<1x128xf32>
    %164 = vector.broadcast %163 : vector<1x128xf32> to vector<8x128xf32>
    %165 = arith.addf %162, %164 : vector<8x128xf32>
    %166 = arith.addf %113, %165 : vector<8x128xf32>
    %c0_79 = arith.constant 0 : index
    %c0_80 = arith.constant 0 : index
    %167 = vector.load %arg13[%c0_79, %c0_80] : memref<1x128xf32, #tpu.memory_space<vmem>>, vector<1x128xf32>
    %c0_81 = arith.constant 0 : index
    %c0_82 = arith.constant 0 : index
    %168 = vector.load %arg14[%c0_81, %c0_82] : memref<1x128xf32, #tpu.memory_space<vmem>>, vector<1x128xf32>
    %cst_83 = arith.constant dense<0.000000e+00> : vector<8xf32>
    %169 = vector.multi_reduction <add>, %166, %cst_83 [1] : vector<8x128xf32> to vector<8xf32>
    %170 = vector.shape_cast %169 : vector<8xf32> to vector<8x1xf32>
    %171 = arith.mulf %166, %166 : vector<8x128xf32>
    %cst_84 = arith.constant dense<0.000000e+00> : vector<8xf32>
    %172 = vector.multi_reduction <add>, %171, %cst_84 [1] : vector<8x128xf32> to vector<8xf32>
    %173 = vector.shape_cast %172 : vector<8xf32> to vector<8x1xf32>
    %cst_85 = arith.constant 7.812500e-03 : f32
    %174 = vector.broadcast %cst_85 : f32 to vector<8x1xf32>
    %175 = arith.mulf %170, %174 : vector<8x1xf32>
    %cst_86 = arith.constant 7.812500e-03 : f32
    %176 = vector.broadcast %cst_86 : f32 to vector<8x1xf32>
    %177 = arith.mulf %173, %176 : vector<8x1xf32>
    %178 = arith.mulf %175, %175 : vector<8x1xf32>
    %179 = arith.subf %177, %178 : vector<8x1xf32>
    %180 = vector.broadcast %175 : vector<8x1xf32> to vector<8x128xf32>
    %181 = arith.subf %166, %180 : vector<8x128xf32>
    %cst_87 = arith.constant 9.99999974E-6 : f32
    %182 = vector.broadcast %cst_87 : f32 to vector<8x1xf32>
    %183 = arith.addf %179, %182 : vector<8x1xf32>
    %184 = math.rsqrt %183 : vector<8x1xf32>
    %185 = vector.broadcast %184 : vector<8x1xf32> to vector<8x128xf32>
    %186 = arith.mulf %181, %185 : vector<8x128xf32>
    %187 = vector.broadcast %167 : vector<1x128xf32> to vector<8x128xf32>
    %188 = arith.mulf %186, %187 : vector<8x128xf32>
    %189 = vector.broadcast %168 : vector<1x128xf32> to vector<8x128xf32>
    %190 = arith.addf %188, %189 : vector<8x128xf32>
    %c0_88 = arith.constant 0 : index
    %c0_89 = arith.constant 0 : index
    %c0_90 = arith.constant 0 : index
    %191 = vector.load %arg15[%c0_88, %c0_89, %c0_90] : memref<1x8x128xf32, #tpu.memory_space<vmem>>, vector<1x8x128xf32>
    %192 = vector.shape_cast %191 : vector<1x8x128xf32> to vector<8x128xf32>
    %193 = vector.shape_cast %190 : vector<8x128xf32> to vector<1x8x128xf32>
    tpu.vector_store %arg15[%c0_88, %c0_89, %c0_90], %193 {strides = array<i32>} : memref<1x8x128xf32, #tpu.memory_space<vmem>>, vector<1x8x128xf32>,
    %c0_91 = arith.constant 0 : index
    %c0_92 = arith.constant 0 : index
    %c0_93 = arith.constant 0 : index
    %194 = vector.load %arg16[%c0_91, %c0_92, %c0_93] : memref<1x8x128xf32, #tpu.memory_space<vmem>>, vector<1x8x128xf32>
    %195 = vector.shape_cast %194 : vector<1x8x128xf32> to vector<8x128xf32>
    %196 = vector.shape_cast %165 : vector<8x128xf32> to vector<1x8x128xf32>
    tpu.vector_store %arg16[%c0_91, %c0_92, %c0_93], %196 {strides = array<i32>} : memref<1x8x128xf32, #tpu.memory_space<vmem>>, vector<1x8x128xf32>,
    return
  }
  func.func @transform_0(%arg0: i32, %arg1: i32) -> (i32, i32, i32) {
    %c0_i32 = arith.constant 0 : i32
    %c0_i32_0 = arith.constant 0 : i32
    %c0_i32_1 = arith.constant 0 : i32
    return %arg0, %c0_i32, %c0_i32_0 : i32, i32, i32
  }
  func.func @transform_1(%arg0: i32, %arg1: i32) -> (i32, i32) {
    %c0_i32 = arith.constant 0 : i32
    %c0_i32_0 = arith.constant 0 : i32
    %c0_i32_1 = arith.constant 0 : i32
    return %c0_i32, %c0_i32_0 : i32, i32
  }
  func.func @transform_2(%arg0: i32, %arg1: i32) -> (i32, i32) {
    %c0_i32 = arith.constant 0 : i32
    %c0_i32_0 = arith.constant 0 : i32
    %c0_i32_1 = arith.constant 0 : i32
    return %c0_i32, %c0_i32_0 : i32, i32
  }
  func.func @transform_3(%arg0: i32, %arg1: i32) -> (i32, i32) {
    %c0_i32 = arith.constant 0 : i32
    %c0_i32_0 = arith.constant 0 : i32
    %c0_i32_1 = arith.constant 0 : i32
    return %c0_i32, %c0_i32_0 : i32, i32
  }
  func.func @transform_4(%arg0: i32, %arg1: i32) -> (i32, i32) {
    %c0_i32 = arith.constant 0 : i32
    %c0_i32_0 = arith.constant 0 : i32
    %c0_i32_1 = arith.constant 0 : i32
    return %c0_i32, %c0_i32_0 : i32, i32
  }
  func.func @transform_5(%arg0: i32, %arg1: i32) -> (i32, i32) {
    %c0_i32 = arith.constant 0 : i32
    %c0_i32_0 = arith.constant 0 : i32
    %c0_i32_1 = arith.constant 0 : i32
    return %c0_i32, %c0_i32_0 : i32, i32
  }
  func.func @transform_6(%arg0: i32, %arg1: i32) -> (i32, i32) {
    %c0_i32 = arith.constant 0 : i32
    %c0_i32_0 = arith.constant 0 : i32
    %c0_i32_1 = arith.constant 0 : i32
    return %c0_i32, %c0_i32_0 : i32, i32
  }
  func.func @transform_7(%arg0: i32, %arg1: i32) -> (i32, i32) {
    %c0_i32 = arith.constant 0 : i32
    %c0_i32_0 = arith.constant 0 : i32
    %c0_i32_1 = arith.constant 0 : i32
    return %c0_i32, %c0_i32_0 : i32, i32
  }
  func.func @transform_8(%arg0: i32, %arg1: i32) -> (i32, i32) {
    %c0_i32 = arith.constant 0 : i32
    %c0_i32_0 = arith.constant 0 : i32
    %c0_i32_1 = arith.constant 0 : i32
    return %c0_i32, %c0_i32_0 : i32, i32
  }
  func.func @transform_9(%arg0: i32, %arg1: i32) -> (i32, i32) {
    %c0_i32 = arith.constant 0 : i32
    %c0_i32_0 = arith.constant 0 : i32
    %c0_i32_1 = arith.constant 0 : i32
    return %c0_i32, %c0_i32_0 : i32, i32
  }
  func.func @transform_10(%arg0: i32, %arg1: i32) -> (i32, i32) {
    %c0_i32 = arith.constant 0 : i32
    %c0_i32_0 = arith.constant 0 : i32
    %c0_i32_1 = arith.constant 0 : i32
    return %c0_i32, %c0_i32_0 : i32, i32
  }
  func.func @transform_11(%arg0: i32, %arg1: i32) -> (i32, i32) {
    %c0_i32 = arith.constant 0 : i32
    %c0_i32_0 = arith.constant 0 : i32
    %c0_i32_1 = arith.constant 0 : i32
    return %c0_i32, %c0_i32_0 : i32, i32
  }
  func.func @transform_12(%arg0: i32, %arg1: i32) -> (i32, i32) {
    %c0_i32 = arith.constant 0 : i32
    %c0_i32_0 = arith.constant 0 : i32
    %c0_i32_1 = arith.constant 0 : i32
    return %c0_i32, %c0_i32_0 : i32, i32
  }
  func.func @transform_13(%arg0: i32, %arg1: i32) -> (i32, i32, i32) {
    %c0_i32 = arith.constant 0 : i32
    %c0_i32_0 = arith.constant 0 : i32
    return %arg0, %arg1, %c0_i32 : i32, i32, i32
  }
  func.func @transform_14(%arg0: i32, %arg1: i32) -> (i32, i32, i32) {
    %c0_i32 = arith.constant 0 : i32
    %c0_i32_0 = arith.constant 0 : i32
    return %arg0, %arg1, %c0_i32 : i32, i32, i32
  }
}

</mosaic_0001>

<llo_original>
// kernel: tpu_custom_call.1
$region0: #{tpu_custom_call.1}
  #allocation0 [shape = 'u32[]', space=smem, size = 0x4, offset = 0x4, fixed_abs, tag = 'smem constant byte address 0x4 - core index']
  #allocation1 [shape = 'u32[72,128]{1,0:T(1,128)}', space=vmem, size = 0x9000, scoped, tag = 'internal scratch']
  #allocation2 [shape = 'bf16[16,256]{1,0:T(8,128)(2,1)}', space=vmem, size = 0x2000, scoped, tag = 'scratch operand']
  #allocation3 [shape = 'f32[8,128]{1,0:T(8,128)}', space=vmem, size = 0x1000, scoped, tag = 'scratch operand']
  %s0 = inlined_call_operand.hbm [shape: f32[2,16,128], index: 0, kind: input, shape index: {}]
  %s1 = inlined_call_operand.hbm [shape: bf16[128,128], index: 1, kind: input, shape index: {}]
  %s2 = inlined_call_operand.hbm [shape: bf16[128,256], index: 2, kind: input, shape index: {}]
  %s3 = inlined_call_operand.hbm [shape: bf16[128,128], index: 3, kind: input, shape index: {}]
  %s4 = inlined_call_operand.vmem [shape: f32[1,128], index: 4, kind: input, shape index: {}]
  %s5 = inlined_call_operand.vmem [shape: f32[1,128], index: 5, kind: input, shape index: {}]
  %s6 = inlined_call_operand.vmem [shape: f32[1,128], index: 6, kind: input, shape index: {}]
  %s7 = inlined_call_operand.hbm [shape: bf16[128,512], index: 7, kind: input, shape index: {}]
  %s8 = inlined_call_operand.vmem [shape: f32[1,512], index: 8, kind: input, shape index: {}]
  %s9 = inlined_call_operand.hbm [shape: bf16[512,128], index: 9, kind: input, shape index: {}]
  %s10 = inlined_call_operand.vmem [shape: f32[1,128], index: 10, kind: input, shape index: {}]
  %s11 = inlined_call_operand.vmem [shape: f32[1,128], index: 11, kind: input, shape index: {}]
  %s12 = inlined_call_operand.vmem [shape: f32[1,128], index: 12, kind: input, shape index: {}]
  %s13 = inlined_call_operand.hbm [shape: f32[2,16,128], index: 13, kind: output, shape index: {0}]
  %s14 = inlined_call_operand.hbm [shape: f32[2,16,128], index: 14, kind: output, shape index: {1}]
  %15 = xla_tuple %s13, %s14
  %s16 = sld [smem:[#allocation0]]
  $region121: #{tpu_custom_call.1} parent=0
    _
  %s18 = ssub.s32 1, %s16
  %s19 = scalar_select 0, %s18, %s16
  $region1: #{tpu_custom_call.1} parent=0
    #allocation4 [shape = 'u8[16384]{0}', space=vmem, size = 0x4000, scoped, tag = 'input window, operand 0']
    #allocation5 [shape = 's32[2]{0}', space=sflag, size = 0x8, scoped, tag = 'scoped memory for tpu_custom_call.1']
    #allocation6 [shape = 's32[2]{0}', space=sflag, size = 0x8, scoped, tag = 'scoped memory for tpu_custom_call.1']
    #allocation7 [shape = 'u8[32768]{0}', space=vmem, size = 0x8000, scoped, tag = 'input window, operand 1, single buffered']
    #allocation8 [shape = 's32[1]{0}', space=sflag, size = 0x4, scoped, tag = 'scoped memory for tpu_custom_call.1']
    #allocation9 [shape = 'u8[65536]{0}', space=vmem, size = 0x10000, scoped, tag = 'input window, operand 2, single buffered']
    #allocation10 [shape = 'u8[32768]{0}', space=vmem, size = 0x8000, scoped, tag = 'input window, operand 3, single buffered']
    #allocation11 [shape = 's32[1]{0}', space=sflag, size = 0x4, scoped, tag = 'scoped memory for tpu_custom_call.1']
    #allocation12 [shape = 'u8[131072]{0}', space=vmem, size = 0x20000, scoped, tag = 'input window, operand 7, single buffered']
    #allocation13 [shape = 'u8[131072]{0}', space=vmem, size = 0x20000, scoped, tag = 'input window, operand 9, single buffered']
    #allocation14 [shape = 's32[1]{0}', space=sflag, size = 0x4, scoped, tag = 'scoped memory for tpu_custom_call.1']
    #allocation15 [shape = 'u8[8192]{0}', space=vmem, size = 0x2000, scoped, tag = 'output window, operand 0']
    #allocation16 [shape = 'u8[8192]{0}', space=vmem, size = 0x2000, scoped, tag = 'output window, operand 1']
    #allocation17 [shape = 's32[2]{0}', space=sflag, size = 0x8, scoped, tag = 'scoped memory for tpu_custom_call.1']
    %20 = vsyncpa [#allocation5], 0
    %s21 = scalar_lea.sflag [#allocation5], 1
    %22 = vsyncpa %s21, 0
    %23 = vsyncpa [#allocation8], 0
    %24 = vsyncpa [#allocation11], 0
    %25 = vsyncpa [#allocation14], 0
    %26 = vsyncpa [#allocation6], 0
    %s27 = scalar_lea.sflag [#allocation6], 1
    %28 = vsyncpa %s27, 0
    %29 = vsyncpa [#allocation17], 0
    %s30 = scalar_lea.sflag [#allocation17], 1
    %31 = vsyncpa %s30, 0
    loop: start=0, step=1, limit=6
    $region2: #{tpu_custom_call.1} parent=1 // loop_pre_header
      _
    $region3: #{tpu_custom_call.1} parent=1 // loop_header
      %s33 = sphi 0, %s37
      %p34 = scmp.ge.s32.totalorder %s33, 6
      %s40 = sphi 0, %s52
      %s41 = sphi 0, %s48
      %s42 = sphi 0, %s40
      %s43 = sphi 0, %s41
      %s44 = sphi 0, %s42
      %s45 = sphi 0, %s43
      %s55 = sphi 0, %s57
      %s58 = sphi 0, %s55
      %s59 = sphi 0, %s58
      %s75 = sphi 0, %s59
      %s79 = sphi 0, %s79
      %s81 = sphi 0, %s79
      %s82 = sphi 0, %s81
      %s96 = sphi 0, %s82
      %s100 = sphi 0, %s100
      %s102 = sphi 0, %s100
      %s103 = sphi 0, %s102
      %s117 = sphi 0, %s103
      %s121 = sphi 0, %s121
      %s123 = sphi 0, %s121
      %s124 = sphi 0, %s123
      %s138 = sphi 0, %s124
      %s142 = sphi 0, %s142
      %s144 = sphi 0, %s142
      %s145 = sphi 0, %s144
      %s159 = sphi 0, %s145
      %s163 = sphi 0, %s163
      %s165 = sphi 0, %s163
      %s166 = sphi 0, %s165
      %s180 = sphi 0, %s166
      %s184 = sphi 0, %s184
      %s186 = sphi 0, %s184
      %s187 = sphi 0, %s186
      %s201 = sphi 0, %s187
      %s205 = sphi 0, %s205
      %s207 = sphi 0, %s205
      %s208 = sphi 0, %s207
      %s222 = sphi 0, %s208
      %s226 = sphi 0, %s226
      %s228 = sphi 0, %s226
      %s229 = sphi 0, %s228
      %s243 = sphi 0, %s229
      %s247 = sphi 0, %s247
      %s249 = sphi 0, %s247
      %s250 = sphi 0, %s249
      %s264 = sphi 0, %s250
      %s268 = sphi 0, %s268
      %s270 = sphi 0, %s268
      %s271 = sphi 0, %s270
      %s285 = sphi 0, %s271
      %s289 = sphi 0, %s289
      %s291 = sphi 0, %s289
      %s292 = sphi 0, %s291
      %s306 = sphi 0, %s292
      %s310 = sphi 0, %s310
      %s312 = sphi 0, %s310
      %s313 = sphi 0, %s312
      %s327 = sphi 0, %s313
      %s335 = sphi 0, %s337
      %s338 = sphi 0, %s335
      %s339 = sphi 0, %s338
      %s355 = sphi 0, %s339
      %s363 = sphi 0, %s365
      %s366 = sphi 0, %s363
      %s367 = sphi 0, %s366
      %s383 = sphi 0, %s367
    $region4: #{tpu_custom_call.1} parent=1 // loop_header_branch
      %36 = sbr.rel (%p34) target = $region8
    $region5: #{tpu_custom_call.1} parent=1 // loop_body
      %s38 = ssub.s32 %s33, 1
      %s39 = ssub.s32 %s33, 2
      %s46 = sadd.s32 1, %s41
      %p47 = scmp.ge.s32.totalorder %s46, 2
      %s48 = scalar_select %p47, 0, %s46
      %s49 = sadd.s32 1, %s40
      %s50 = scalar_select %p47, %s49, %s40
      %p51 = scmp.ge.s32.totalorder %s50, 2
      %s52 = scalar_select %p51, 0, %s50
      %s53 = ssub.s32 %s40, %s52
      %p54 = scmp.eq.s32.totalorder %s53, 0
      %s56 = sadd.s32 %s55, 1
      %s57 = scalar_select %p54, %s55, %s56
      %p60 = pneg %p54
      %p61 = scmp.eq.s32.totalorder %s33, 3
      %p62 = por %p60, %p61
      %p63 = scmp.ne.s32.totalorder %s55, %s58
      %p64 = scmp.eq.s32.totalorder %s33, 0
      %p65 = por %p63, %p64
      %p66 = scmp.ne.s32.totalorder %s55, %s58
      %p67 = scmp.eq.s32.totalorder %s38, 3
      %p68 = por %p66, %p67
      %p69 = scmp.ne.s32.totalorder %s58, %s59
      %p70 = scmp.eq.s32.totalorder %s38, 0
      %p71 = por %p69, %p70
      %p72 = scmp.ne.s32.totalorder %s58, %s59
      %p73 = scmp.eq.s32.totalorder %s39, 3
      %p74 = por %p72, %p73
      %p76 = scmp.ne.s32.totalorder %s59, %s75
      %p77 = scmp.eq.s32.totalorder %s39, 0
      %p78 = por %p76, %p77
      %s80 = sadd.s32 %s79, 1
      %p83 = scmp.eq.s32.totalorder %s33, 3
      %p84 = scmp.ne.s32.totalorder %s79, %s81
      %p85 = scmp.eq.s32.totalorder %s33, 0
      %p86 = por %p84, %p85
      %p87 = scmp.ne.s32.totalorder %s79, %s81
      %p88 = scmp.eq.s32.totalorder %s38, 3
      %p89 = por %p87, %p88
      %p90 = scmp.ne.s32.totalorder %s81, %s82
      %p91 = scmp.eq.s32.totalorder %s38, 0
      %p92 = por %p90, %p91
      %p93 = scmp.ne.s32.totalorder %s81, %s82
      %p94 = scmp.eq.s32.totalorder %s39, 3
      %p95 = por %p93, %p94
      %p97 = scmp.ne.s32.totalorder %s82, %s96
      %p98 = scmp.eq.s32.totalorder %s39, 0
      %p99 = por %p97, %p98
      %s101 = sadd.s32 %s100, 1
      %p104 = scmp.eq.s32.totalorder %s33, 3
      %p105 = scmp.ne.s32.totalorder %s100, %s102
      %p106 = scmp.eq.s32.totalorder %s33, 0
      %p107 = por %p105, %p106
      %p108 = scmp.ne.s32.totalorder %s100, %s102
      %p109 = scmp.eq.s32.totalorder %s38, 3
      %p110 = por %p108, %p109
      %p111 = scmp.ne.s32.totalorder %s102, %s103
      %p112 = scmp.eq.s32.totalorder %s38, 0
      %p113 = por %p111, %p112
      %p114 = scmp.ne.s32.totalorder %s102, %s103
      %p115 = scmp.eq.s32.totalorder %s39, 3
      %p116 = por %p114, %p115
      %p118 = scmp.ne.s32.totalorder %s103, %s117
      %p119 = scmp.eq.s32.totalorder %s39, 0
      %p120 = por %p118, %p119
      %s122 = sadd.s32 %s121, 1
      %p125 = scmp.eq.s32.totalorder %s33, 3
      %p126 = scmp.ne.s32.totalorder %s121, %s123
      %p127 = scmp.eq.s32.totalorder %s33, 0
      %p128 = por %p126, %p127
      %p129 = scmp.ne.s32.totalorder %s121, %s123
      %p130 = scmp.eq.s32.totalorder %s38, 3
      %p131 = por %p129, %p130
      %p132 = scmp.ne.s32.totalorder %s123, %s124
      %p133 = scmp.eq.s32.totalorder %s38, 0
      %p134 = por %p132, %p133
      %p135 = scmp.ne.s32.totalorder %s123, %s124
      %p136 = scmp.eq.s32.totalorder %s39, 3
      %p137 = por %p135, %p136
      %p139 = scmp.ne.s32.totalorder %s124, %s138
      %p140 = scmp.eq.s32.totalorder %s39, 0
      %p141 = por %p139, %p140
      %s143 = sadd.s32 %s142, 1
      %p146 = scmp.eq.s32.totalorder %s33, 3
      %p147 = scmp.ne.s32.totalorder %s142, %s144
      %p148 = scmp.eq.s32.totalorder %s33, 0
      %p149 = por %p147, %p148
      %p150 = scmp.ne.s32.totalorder %s142, %s144
      %p151 = scmp.eq.s32.totalorder %s38, 3
      %p152 = por %p150, %p151
      %p153 = scmp.ne.s32.totalorder %s144, %s145
      %p154 = scmp.eq.s32.totalorder %s38, 0
      %p155 = por %p153, %p154
      %p156 = scmp.ne.s32.totalorder %s144, %s145
      %p157 = scmp.eq.s32.totalorder %s39, 3
      %p158 = por %p156, %p157
      %p160 = scmp.ne.s32.totalorder %s145, %s159
      %p161 = scmp.eq.s32.totalorder %s39, 0
      %p162 = por %p160, %p161
      %s164 = sadd.s32 %s163, 1
      %p167 = scmp.eq.s32.totalorder %s33, 3
      %p168 = scmp.ne.s32.totalorder %s163, %s165
      %p169 = scmp.eq.s32.totalorder %s33, 0
      %p170 = por %p168, %p169
      %p171 = scmp.ne.s32.totalorder %s163, %s165
      %p172 = scmp.eq.s32.totalorder %s38, 3
      %p173 = por %p171, %p172
      %p174 = scmp.ne.s32.totalorder %s165, %s166
      %p175 = scmp.eq.s32.totalorder %s38, 0
      %p176 = por %p174, %p175
      %p177 = scmp.ne.s32.totalorder %s165, %s166
      %p178 = scmp.eq.s32.totalorder %s39, 3
      %p179 = por %p177, %p178
      %p181 = scmp.ne.s32.totalorder %s166, %s180
      %p182 = scmp.eq.s32.totalorder %s39, 0
      %p183 = por %p181, %p182
      %s185 = sadd.s32 %s184, 1
      %p188 = scmp.eq.s32.totalorder %s33, 3
      %p189 = scmp.ne.s32.totalorder %s184, %s186
      %p190 = scmp.eq.s32.totalorder %s33, 0
      %p191 = por %p189, %p190
      %p192 = scmp.ne.s32.totalorder %s184, %s186
      %p193 = scmp.eq.s32.totalorder %s38, 3
      %p194 = por %p192, %p193
      %p195 = scmp.ne.s32.totalorder %s186, %s187
      %p196 = scmp.eq.s32.totalorder %s38, 0
      %p197 = por %p195, %p196
      %p198 = scmp.ne.s32.totalorder %s186, %s187
      %p199 = scmp.eq.s32.totalorder %s39, 3
      %p200 = por %p198, %p199
      %p202 = scmp.ne.s32.totalorder %s187, %s201
      %p203 = scmp.eq.s32.totalorder %s39, 0
      %p204 = por %p202, %p203
      %s206 = sadd.s32 %s205, 1
      %p209 = scmp.eq.s32.totalorder %s33, 3
      %p210 = scmp.ne.s32.totalorder %s205, %s207
      %p211 = scmp.eq.s32.totalorder %s33, 0
      %p212 = por %p210, %p211
      %p213 = scmp.ne.s32.totalorder %s205, %s207
      %p214 = scmp.eq.s32.totalorder %s38, 3
      %p215 = por %p213, %p214
      %p216 = scmp.ne.s32.totalorder %s207, %s208
      %p217 = scmp.eq.s32.totalorder %s38, 0
      %p218 = por %p216, %p217
      %p219 = scmp.ne.s32.totalorder %s207, %s208
      %p220 = scmp.eq.s32.totalorder %s39, 3
      %p221 = por %p219, %p220
      %p223 = scmp.ne.s32.totalorder %s208, %s222
      %p224 = scmp.eq.s32.totalorder %s39, 0
      %p225 = por %p223, %p224
      %s227 = sadd.s32 %s226, 1
      %p230 = scmp.eq.s32.totalorder %s33, 3
      %p231 = scmp.ne.s32.totalorder %s226, %s228
      %p232 = scmp.eq.s32.totalorder %s33, 0
      %p233 = por %p231, %p232
      %p234 = scmp.ne.s32.totalorder %s226, %s228
      %p235 = scmp.eq.s32.totalorder %s38, 3
      %p236 = por %p234, %p235
      %p237 = scmp.ne.s32.totalorder %s228, %s229
      %p238 = scmp.eq.s32.totalorder %s38, 0
      %p239 = por %p237, %p238
      %p240 = scmp.ne.s32.totalorder %s228, %s229
      %p241 = scmp.eq.s32.totalorder %s39, 3
      %p242 = por %p240, %p241
      %p244 = scmp.ne.s32.totalorder %s229, %s243
      %p245 = scmp.eq.s32.totalorder %s39, 0
      %p246 = por %p244, %p245
      %s248 = sadd.s32 %s247, 1
      %p251 = scmp.eq.s32.totalorder %s33, 3
      %p252 = scmp.ne.s32.totalorder %s247, %s249
      %p253 = scmp.eq.s32.totalorder %s33, 0
      %p254 = por %p252, %p253
      %p255 = scmp.ne.s32.totalorder %s247, %s249
      %p256 = scmp.eq.s32.totalorder %s38, 3
      %p257 = por %p255, %p256
      %p258 = scmp.ne.s32.totalorder %s249, %s250
      %p259 = scmp.eq.s32.totalorder %s38, 0
      %p260 = por %p258, %p259
      %p261 = scmp.ne.s32.totalorder %s249, %s250
      %p262 = scmp.eq.s32.totalorder %s39, 3
      %p263 = por %p261, %p262
      %p265 = scmp.ne.s32.totalorder %s250, %s264
      %p266 = scmp.eq.s32.totalorder %s39, 0
      %p267 = por %p265, %p266
      %s269 = sadd.s32 %s268, 1
      %p272 = scmp.eq.s32.totalorder %s33, 3
      %p273 = scmp.ne.s32.totalorder %s268, %s270
      %p274 = scmp.eq.s32.totalorder %s33, 0
      %p275 = por %p273, %p274
      %p276 = scmp.ne.s32.totalorder %s268, %s270
      %p277 = scmp.eq.s32.totalorder %s38, 3
      %p278 = por %p276, %p277
      %p279 = scmp.ne.s32.totalorder %s270, %s271
      %p280 = scmp.eq.s32.totalorder %s38, 0
      %p281 = por %p279, %p280
      %p282 = scmp.ne.s32.totalorder %s270, %s271
      %p283 = scmp.eq.s32.totalorder %s39, 3
      %p284 = por %p282, %p283
      %p286 = scmp.ne.s32.totalorder %s271, %s285
      %p287 = scmp.eq.s32.totalorder %s39, 0
      %p288 = por %p286, %p287
      %s290 = sadd.s32 %s289, 1
      %p293 = scmp.eq.s32.totalorder %s33, 3
      %p294 = scmp.ne.s32.totalorder %s289, %s291
      %p295 = scmp.eq.s32.totalorder %s33, 0
      %p296 = por %p294, %p295
      %p297 = scmp.ne.s32.totalorder %s289, %s291
      %p298 = scmp.eq.s32.totalorder %s38, 3
      %p299 = por %p297, %p298
      %p300 = scmp.ne.s32.totalorder %s291, %s292
      %p301 = scmp.eq.s32.totalorder %s38, 0
      %p302 = por %p300, %p301
      %p303 = scmp.ne.s32.totalorder %s291, %s292
      %p304 = scmp.eq.s32.totalorder %s39, 3
      %p305 = por %p303, %p304
      %p307 = scmp.ne.s32.totalorder %s292, %s306
      %p308 = scmp.eq.s32.totalorder %s39, 0
      %p309 = por %p307, %p308
      %s311 = sadd.s32 %s310, 1
      %p314 = scmp.eq.s32.totalorder %s33, 3
      %p315 = scmp.ne.s32.totalorder %s310, %s312
      %p316 = scmp.eq.s32.totalorder %s33, 0
      %p317 = por %p315, %p316
      %p318 = scmp.ne.s32.totalorder %s310, %s312
      %p319 = scmp.eq.s32.totalorder %s38, 3
      %p320 = por %p318, %p319
      %p321 = scmp.ne.s32.totalorder %s312, %s313
      %p322 = scmp.eq.s32.totalorder %s38, 0
      %p323 = por %p321, %p322
      %p324 = scmp.ne.s32.totalorder %s312, %s313
      %p325 = scmp.eq.s32.totalorder %s39, 3
      %p326 = por %p324, %p325
      %p328 = scmp.ne.s32.totalorder %s313, %s327
      %p329 = scmp.eq.s32.totalorder %s39, 0
      %p330 = por %p328, %p329
      %s331 = ssub.s32 %s40, %s52
      %s332 = ssub.s32 %s41, %s48
      %s333 = sor.u32 %s331, %s332
      %p334 = scmp.eq.s32.totalorder %s333, 0
      %s336 = sadd.s32 %s335, 1
      %s337 = scalar_select %p334, %s335, %s336
      %p340 = pneg %p334
      %p341 = scmp.eq.s32.totalorder %s33, 3
      %p342 = por %p340, %p341
      %p343 = scmp.ne.s32.totalorder %s335, %s338
      %p344 = scmp.eq.s32.totalorder %s33, 0
      %p345 = por %p343, %p344
      %p346 = scmp.ne.s32.totalorder %s335, %s338
      %p347 = scmp.eq.s32.totalorder %s38, 3
      %p348 = por %p346, %p347
      %p349 = scmp.ne.s32.totalorder %s338, %s339
      %p350 = scmp.eq.s32.totalorder %s38, 0
      %p351 = por %p349, %p350
      %p352 = scmp.ne.s32.totalorder %s338, %s339
      %p353 = scmp.eq.s32.totalorder %s39, 3
      %p354 = por %p352, %p353
      %p356 = scmp.ne.s32.totalorder %s339, %s355
      %p357 = scmp.eq.s32.totalorder %s39, 0
      %p358 = por %p356, %p357
      %s359 = ssub.s32 %s40, %s52
      %s360 = ssub.s32 %s41, %s48
      %s361 = sor.u32 %s359, %s360
      %p362 = scmp.eq.s32.totalorder %s361, 0
      %s364 = sadd.s32 %s363, 1
      %s365 = scalar_select %p362, %s363, %s364
      %p368 = pneg %p362
      %p369 = scmp.eq.s32.totalorder %s33, 3
      %p370 = por %p368, %p369
      %p371 = scmp.ne.s32.totalorder %s363, %s366
      %p372 = scmp.eq.s32.totalorder %s33, 0
      %p373 = por %p371, %p372
      %p374 = scmp.ne.s32.totalorder %s363, %s366
      %p375 = scmp.eq.s32.totalorder %s38, 3
      %p376 = por %p374, %p375
      %p377 = scmp.ne.s32.totalorder %s366, %s367
      %p378 = scmp.eq.s32.totalorder %s38, 0
      %p379 = por %p377, %p378
      %p380 = scmp.ne.s32.totalorder %s366, %s367
      %p381 = scmp.eq.s32.totalorder %s39, 3
      %p382 = por %p380, %p381
      %p384 = scmp.ne.s32.totalorder %s367, %s383
      %p385 = scmp.eq.s32.totalorder %s39, 0
      %p386 = por %p384, %p385
      %p387 = scmp.le.s32.totalorder 1, %s33
      %p388 = scmp.lt.s32.totalorder %s33, 5
      %p389 = pnand %p387, %p388
      %p390 = pneg %p389
      // Predicated region
      $region9: #{tpu_custom_call.1} parent=5 // pred_check
        _
      $region10: #{tpu_custom_call.1} parent=5 // pred_check_branch
        %392 = sbr.rel (%p389) target = $region12
      $region11: #{tpu_custom_call.1} parent=5 // pred_region
        %s393 = ssub.s32 %s33, 1
        // Predicated region
        $region13: #{tpu_custom_call.1} parent=11 // pred_check
          %p394 = pneg %p92
        $region14: #{tpu_custom_call.1} parent=11 // pred_check_branch
          %396 = sbr.rel (%p394) target = $region16
        $region15: #{tpu_custom_call.1} parent=11 // pred_region
          %398 = vsyncadd [#allocation8], 0
          %s399 = sshll.u32 %s1, 4
          %s400 = int_to_ptr.hbm [resolvable:$true] %s399
          %s401 = sshll.u32 [#allocation7], 4
          %s402 = int_to_ptr.vmem [resolvable:$true] %s401
          %407 = dma.hbm_to_vmem [thread:$0]  %s400, 1024, %s402, [#allocation8], 64, 64, 4
        $region16: #{tpu_custom_call.1} parent=11 // pred_fallthru
          _
        // Predicated region
        $region17: #{tpu_custom_call.1} parent=11 // pred_check
          %p408 = pneg %p113
        $region18: #{tpu_custom_call.1} parent=11 // pred_check_branch
          %410 = sbr.rel (%p408) target = $region20
        $region19: #{tpu_custom_call.1} parent=11 // pred_region
          %412 = vsyncadd [#allocation8], 0
          %s413 = sshll.u32 %s2, 4
          %s414 = int_to_ptr.hbm [resolvable:$true] %s413
          %s415 = sshll.u32 [#allocation9], 4
          %s416 = int_to_ptr.vmem [resolvable:$true] %s415
          %421 = dma.hbm_to_vmem [thread:$0]  %s414, 2048, %s416, [#allocation8], 128, 128, 8
        $region20: #{tpu_custom_call.1} parent=11 // pred_fallthru
          _
        // Predicated region
        $region21: #{tpu_custom_call.1} parent=11 // pred_check
          %p422 = pneg %p134
        $region22: #{tpu_custom_call.1} parent=11 // pred_check_branch
          %424 = sbr.rel (%p422) target = $region24
        $region23: #{tpu_custom_call.1} parent=11 // pred_region
          %426 = vsyncadd [#allocation11], 0
          %s427 = sshll.u32 %s3, 4
          %s428 = int_to_ptr.hbm [resolvable:$true] %s427
          %s429 = sshll.u32 [#allocation10], 4
          %s430 = int_to_ptr.vmem [resolvable:$true] %s429
          %435 = dma.hbm_to_vmem [thread:$0]  %s428, 1024, %s430, [#allocation11], 64, 64, 4
        $region24: #{tpu_custom_call.1} parent=11 // pred_fallthru
          _
        // Predicated region
        $region25: #{tpu_custom_call.1} parent=11 // pred_check
          %p436 = pneg %p155
        $region26: #{tpu_custom_call.1} parent=11 // pred_check_branch
          %438 = sbr.rel (%p436) target = $region28
        $region27: #{tpu_custom_call.1} parent=11 // pred_region
          _
        $region28: #{tpu_custom_call.1} parent=11 // pred_fallthru
          _
        // Predicated region
        $region29: #{tpu_custom_call.1} parent=11 // pred_check
          %p439 = pneg %p176
        $region30: #{tpu_custom_call.1} parent=11 // pred_check_branch
          %441 = sbr.rel (%p439) target = $region32
        $region31: #{tpu_custom_call.1} parent=11 // pred_region
          _
        $region32: #{tpu_custom_call.1} parent=11 // pred_fallthru
          _
        // Predicated region
        $region33: #{tpu_custom_call.1} parent=11 // pred_check
          %p442 = pneg %p197
        $region34: #{tpu_custom_call.1} parent=11 // pred_check_branch
          %444 = sbr.rel (%p442) target = $region36
        $region35: #{tpu_custom_call.1} parent=11 // pred_region
          _
        $region36: #{tpu_custom_call.1} parent=11 // pred_fallthru
          _
        // Predicated region
        $region37: #{tpu_custom_call.1} parent=11 // pred_check
          %p445 = pneg %p218
        $region38: #{tpu_custom_call.1} parent=11 // pred_check_branch
          %447 = sbr.rel (%p445) target = $region40
        $region39: #{tpu_custom_call.1} parent=11 // pred_region
          %449 = vsyncadd [#allocation11], 0
          %s450 = sshll.u32 %s7, 4
          %s451 = int_to_ptr.hbm [resolvable:$true] %s450
          %s452 = sshll.u32 [#allocation12], 4
          %s453 = int_to_ptr.vmem [resolvable:$true] %s452
          %458 = dma.hbm_to_vmem [thread:$0]  %s451, 4096, %s453, [#allocation11], 256, 256, 16
        $region40: #{tpu_custom_call.1} parent=11 // pred_fallthru
          _
        // Predicated region
        $region41: #{tpu_custom_call.1} parent=11 // pred_check
          %p459 = pneg %p239
        $region42: #{tpu_custom_call.1} parent=11 // pred_check_branch
          %461 = sbr.rel (%p459) target = $region44
        $region43: #{tpu_custom_call.1} parent=11 // pred_region
          _
        $region44: #{tpu_custom_call.1} parent=11 // pred_fallthru
          _
        // Predicated region
        $region45: #{tpu_custom_call.1} parent=11 // pred_check
          %p462 = pneg %p260
        $region46: #{tpu_custom_call.1} parent=11 // pred_check_branch
          %464 = sbr.rel (%p462) target = $region48
        $region47: #{tpu_custom_call.1} parent=11 // pred_region
          %466 = vsyncadd [#allocation14], 0
          %s467 = sshll.u32 %s9, 4
          %s468 = int_to_ptr.hbm [resolvable:$true] %s467
          %s469 = sshll.u32 [#allocation13], 4
          %s470 = int_to_ptr.vmem [resolvable:$true] %s469
          %475 = dma.hbm_to_vmem [thread:$0]  %s468, 4096, %s470, [#allocation14], 64, 64, 4
        $region48: #{tpu_custom_call.1} parent=11 // pred_fallthru
          _
        // Predicated region
        $region49: #{tpu_custom_call.1} parent=11 // pred_check
          %p476 = pneg %p281
        $region50: #{tpu_custom_call.1} parent=11 // pred_check_branch
          %478 = sbr.rel (%p476) target = $region52
        $region51: #{tpu_custom_call.1} parent=11 // pred_region
          _
        $region52: #{tpu_custom_call.1} parent=11 // pred_fallthru
          _
        // Predicated region
        $region53: #{tpu_custom_call.1} parent=11 // pred_check
          %p479 = pneg %p302
        $region54: #{tpu_custom_call.1} parent=11 // pred_check_branch
          %481 = sbr.rel (%p479) target = $region56
        $region55: #{tpu_custom_call.1} parent=11 // pred_region
          _
        $region56: #{tpu_custom_call.1} parent=11 // pred_fallthru
          _
        // Predicated region
        $region57: #{tpu_custom_call.1} parent=11 // pred_check
          %p482 = pneg %p323
        $region58: #{tpu_custom_call.1} parent=11 // pred_check_branch
          %484 = sbr.rel (%p482) target = $region60
        $region59: #{tpu_custom_call.1} parent=11 // pred_region
          _
        $region60: #{tpu_custom_call.1} parent=11 // pred_fallthru
          _
      $region12: #{tpu_custom_call.1} parent=5 // pred_fallthru
        _
      %p485 = scmp.lt.s32.totalorder %s33, 4
      // Predicated region
      $region61: #{tpu_custom_call.1} parent=5 // pred_check
        %p486 = pneg %p485
      $region62: #{tpu_custom_call.1} parent=5 // pred_check_branch
        %488 = sbr.rel (%p486) target = $region64
      $region63: #{tpu_custom_call.1} parent=5 // pred_region
        // Predicated region
        $region65: #{tpu_custom_call.1} parent=63 // pred_check
          %p489 = pneg %p65
        $region66: #{tpu_custom_call.1} parent=63 // pred_check_branch
          %491 = sbr.rel (%p489) target = $region68
        $region67: #{tpu_custom_call.1} parent=63 // pred_region
          %s492 = sand.u32 %s55, 1
          %s493 = scalar_lea.sflag [#allocation5], %s492
          %s494 = sand.u32 %s55, 1
          %s495 = smul.addr %s494, 16
          %s496 = scalar_lea.vmem [#allocation4], %s495
          %498 = vsyncadd %s493, 0
          %s499 = smul.addr %s40, 2
          %s500 = smul.addr %s499, 8
          %s501 = scalar_lea.hbm %s0, %s500
          %s502 = sshll.u32 %s501, 4
          %s503 = int_to_ptr.hbm [resolvable:$true] %s502
          %s504 = sshll.u32 %s496, 4
          %s505 = int_to_ptr.vmem [resolvable:$true] %s504
          %510 = dma.hbm_to_vmem [thread:$0]  %s503, 256, %s505, %s493, 128, 128, 8
        $region68: #{tpu_custom_call.1} parent=63 // pred_fallthru
          _
      $region64: #{tpu_custom_call.1} parent=5 // pred_fallthru
        _
      %p511 = scmp.le.s32.totalorder 1, %s33
      %p512 = scmp.lt.s32.totalorder %s33, 5
      %p513 = pnand %p511, %p512
      %p514 = pneg %p513
      // Predicated region
      $region69: #{tpu_custom_call.1} parent=5 // pred_check
        _
      $region70: #{tpu_custom_call.1} parent=5 // pred_check_branch
        %516 = sbr.rel (%p513) target = $region72
      $region71: #{tpu_custom_call.1} parent=5 // pred_region
        %s517 = ssub.s32 %s33, 1
        %s518 = sand.u32 %s58, 1
        %s519 = scalar_lea.sflag [#allocation5], %s518
        %s520 = sand.u32 %s58, 1
        %s521 = smul.addr %s520, 16
        %s522 = scalar_lea.vmem [#allocation4], %s521
        // Predicated region
        $region73: #{tpu_custom_call.1} parent=71 // pred_check
          %p523 = pneg %p71
        $region74: #{tpu_custom_call.1} parent=71 // pred_check_branch
          %525 = sbr.rel (%p523) target = $region76
        $region75: #{tpu_custom_call.1} parent=71 // pred_region
          %527 = dma.done %s519, 256
        $region76: #{tpu_custom_call.1} parent=71 // pred_fallthru
          _
        // Predicated region
        $region77: #{tpu_custom_call.1} parent=71 // pred_check
          %p528 = pneg %p92
        $region78: #{tpu_custom_call.1} parent=71 // pred_check_branch
          %530 = sbr.rel (%p528) target = $region80
        $region79: #{tpu_custom_call.1} parent=71 // pred_region
          %532 = dma.done [#allocation8], 1024
        $region80: #{tpu_custom_call.1} parent=71 // pred_fallthru
          _
        // Predicated region
        $region81: #{tpu_custom_call.1} parent=71 // pred_check
          %p533 = pneg %p113
        $region82: #{tpu_custom_call.1} parent=71 // pred_check_branch
          %535 = sbr.rel (%p533) target = $region84
        $region83: #{tpu_custom_call.1} parent=71 // pred_region
          %537 = dma.done [#allocation8], 2048
        $region84: #{tpu_custom_call.1} parent=71 // pred_fallthru
          _
        // Predicated region
        $region85: #{tpu_custom_call.1} parent=71 // pred_check
          %p538 = pneg %p134
        $region86: #{tpu_custom_call.1} parent=71 // pred_check_branch
          %540 = sbr.rel (%p538) target = $region88
        $region87: #{tpu_custom_call.1} parent=71 // pred_region
          %542 = dma.done [#allocation11], 1024
        $region88: #{tpu_custom_call.1} parent=71 // pred_fallthru
          _
        // Predicated region
        $region89: #{tpu_custom_call.1} parent=71 // pred_check
          %p543 = pneg %p218
        $region90: #{tpu_custom_call.1} parent=71 // pred_check_branch
          %545 = sbr.rel (%p543) target = $region92
        $region91: #{tpu_custom_call.1} parent=71 // pred_region
          %547 = dma.done [#allocation11], 4096
        $region92: #{tpu_custom_call.1} parent=71 // pred_fallthru
          _
        // Predicated region
        $region93: #{tpu_custom_call.1} parent=71 // pred_check
          %p548 = pneg %p260
        $region94: #{tpu_custom_call.1} parent=71 // pred_check_branch
          %550 = sbr.rel (%p548) target = $region96
        $region95: #{tpu_custom_call.1} parent=71 // pred_region
          %552 = dma.done [#allocation14], 4096
        $region96: #{tpu_custom_call.1} parent=71 // pred_fallthru
          _
        %s553 = sand.u32 %s58, 1
        %s554 = scalar_lea.sflag [#allocation5], %s553
        %s555 = sand.u32 %s58, 1
        %s556 = smul.addr %s555, 16
        %s557 = scalar_lea.vmem [#allocation4], %s556
        %p558 = pneg %p71
        %p559 = pneg %p68
        %p560 = pneg %p92
        %p561 = pneg %p89
        %p562 = pneg %p113
        %p563 = pneg %p110
        %p564 = pneg %p134
        %p565 = pneg %p131
        %p566 = pneg %p155
        %p567 = pneg %p152
        %p568 = pneg %p176
        %p569 = pneg %p173
        %p570 = pneg %p197
        %p571 = pneg %p194
        %p572 = pneg %p218
        %p573 = pneg %p215
        %p574 = pneg %p239
        %p575 = pneg %p236
        %p576 = pneg %p260
        %p577 = pneg %p257
        %p578 = pneg %p281
        %p579 = pneg %p278
        %p580 = pneg %p302
        %p581 = pneg %p299
        %p582 = pneg %p323
        %p583 = pneg %p320
        %p584 = pneg %p351
        %p585 = pneg %p348
        %s586 = sand.u32 %s338, 1
        %s587 = scalar_lea.sflag [#allocation6], %s586
        %s588 = sand.u32 %s338, 1
        %s589 = smul.addr %s588, 8
        %s590 = scalar_lea.vmem [#allocation15], %s589
        %p591 = pneg %p379
        %p592 = pneg %p376
        %s593 = sand.u32 %s366, 1
        %s594 = scalar_lea.sflag [#allocation17], %s593
        %s595 = sand.u32 %s366, 1
        %s596 = smul.addr %s595, 8
        %s597 = scalar_lea.vmem [#allocation16], %s596
        %p599 = scmp.eq.s32.totalorder %s43, 0
        // Predicated region
        $region97: #{tpu_custom_call.1} parent=71 // pred_check
          %p600 = pneg %p599
        $region98: #{tpu_custom_call.1} parent=71 // pred_check_branch
          %602 = sbr.rel (%p600) target = $region100
        $region99: #{tpu_custom_call.1} parent=71 // pred_region
          %v603 = vld [vmem:[%s522] sm:$0xff]
          %v604 = vld [vmem:[%s522 + $0x8] sm:$0xff]
          %v605 = vpack.c.bf16 %v604, %v603
          %v606 = vld [vmem:[#allocation9] sm:$0xff]
          %v607 = vld [vmem:[#allocation9 + $0x8] sm:$0xff]
          %v608 = vld [vmem:[#allocation9 + $0x10] sm:$0xff]
          %v609 = vld [vmem:[#allocation9 + $0x18] sm:$0xff]
          %v610 = vld [vmem:[#allocation9 + $0x20] sm:$0xff]
          %v611 = vld [vmem:[#allocation9 + $0x28] sm:$0xff]
          %v612 = vld [vmem:[#allocation9 + $0x30] sm:$0xff]
          %v613 = vld [vmem:[#allocation9 + $0x38] sm:$0xff]
          %v614 = vld [vmem:[#allocation9 + $0x40] sm:$0xff]
          %v615 = vld [vmem:[#allocation9 + $0x48] sm:$0xff]
          %v616 = vld [vmem:[#allocation9 + $0x50] sm:$0xff]
          %v617 = vld [vmem:[#allocation9 + $0x58] sm:$0xff]
          %v618 = vld [vmem:[#allocation9 + $0x60] sm:$0xff]
          %v619 = vld [vmem:[#allocation9 + $0x68] sm:$0xff]
          %v620 = vld [vmem:[#allocation9 + $0x70] sm:$0xff]
          %v621 = vld [vmem:[#allocation9 + $0x78] sm:$0xff]
          %v638 = vunpack.c.l.b16 %v606
          %v639 = vunpack.c.h.b16 %v606
          %v640 = vunpack.c.l.b16 %v607
          %v641 = vunpack.c.h.b16 %v607
          %v642 = vunpack.c.l.b16 %v608
          %v643 = vunpack.c.h.b16 %v608
          %v644 = vunpack.c.l.b16 %v609
          %v645 = vunpack.c.h.b16 %v609
          %v646 = vunpack.c.l.b16 %v610
          %v647 = vunpack.c.h.b16 %v610
          %v648 = vunpack.c.l.b16 %v611
          %v649 = vunpack.c.h.b16 %v611
          %v650 = vunpack.c.l.b16 %v612
          %v651 = vunpack.c.h.b16 %v612
          %v652 = vunpack.c.l.b16 %v613
          %v653 = vunpack.c.h.b16 %v613
          %v654 = vunpack.c.l.b16 %v614
          %v655 = vunpack.c.h.b16 %v614
          %v656 = vunpack.c.l.b16 %v615
          %v657 = vunpack.c.h.b16 %v615
          %v658 = vunpack.c.l.b16 %v616
          %v659 = vunpack.c.h.b16 %v616
          %v660 = vunpack.c.l.b16 %v617
          %v661 = vunpack.c.h.b16 %v617
          %v662 = vunpack.c.l.b16 %v618
          %v663 = vunpack.c.h.b16 %v618
          %v664 = vunpack.c.l.b16 %v619
          %v665 = vunpack.c.h.b16 %v619
          %v666 = vunpack.c.l.b16 %v620
          %v667 = vunpack.c.h.b16 %v620
          %v668 = vunpack.c.l.b16 %v621
          %v669 = vunpack.c.h.b16 %v621
          %v670 = vpack.c.b16 %v640, %v638
          %v671 = vpack.c.b16 %v641, %v639
          %v672 = vpack.c.b16 %v644, %v642
          %v673 = vpack.c.b16 %v645, %v643
          %v674 = vpack.c.b16 %v648, %v646
          %v675 = vpack.c.b16 %v649, %v647
          %v676 = vpack.c.b16 %v652, %v650
          %v677 = vpack.c.b16 %v653, %v651
          %v678 = vpack.c.b16 %v656, %v654
          %v679 = vpack.c.b16 %v657, %v655
          %v680 = vpack.c.b16 %v660, %v658
          %v681 = vpack.c.b16 %v661, %v659
          %v682 = vpack.c.b16 %v664, %v662
          %v683 = vpack.c.b16 %v665, %v663
          %v684 = vpack.c.b16 %v668, %v666
          %v685 = vpack.c.b16 %v669, %v667
          %702 = vmatpush.bf16.msra.mxu0 %v684
          %703 = vmatpush.bf16.msra.mxu0 %v682
          %704 = vmatpush.bf16.msra.mxu0 %v680
          %705 = vmatpush.bf16.msra.mxu0 %v678
          %706 = vmatpush.bf16.msra.mxu0 %v676
          %707 = vmatpush.bf16.msra.mxu0 %v674
          %708 = vmatpush.bf16.msra.mxu0 %v672
          %709 = vmatpush.bf16.msra.mxu0 %v670
          %710 = vmatmul.bf16.gmra.mxu0 %v605
          %v711 = vpop.f32.mrf.mxu0
          %v712 = vadd.f32 0.0, %v711
          %v713 = vpop.f32.mrf.mxu0
          %v714 = vadd.f32 0.0, %v713
          %715 = vdwg.mxu0
          %716 = vmatpush.bf16.msra.mxu0 %v685
          %717 = vmatpush.bf16.msra.mxu0 %v683
          %718 = vmatpush.bf16.msra.mxu0 %v681
          %719 = vmatpush.bf16.msra.mxu0 %v679
          %720 = vmatpush.bf16.msra.mxu0 %v677
          %721 = vmatpush.bf16.msra.mxu0 %v675
          %722 = vmatpush.bf16.msra.mxu0 %v673
          %723 = vmatpush.bf16.msra.mxu0 %v671
          %724 = vmatmul.bf16.gmra.mxu0 %v605
          %v725 = vpop.f32.mrf.mxu0
          %v726 = vadd.f32 0.0, %v725
          %v727 = vpop.f32.mrf.mxu0
          %v728 = vadd.f32 0.0, %v727
          %729 = vdwg.mxu0
          %v730 = vpack.c.bf16 %v726, %v712
          %v731 = vpack.c.bf16 %v728, %v714
          %732 = vst [vmem:[#allocation2] sm:$0xff] %v730
          %733 = vst [vmem:[#allocation2 + $0x8] sm:$0xff] %v731
        $region100: #{tpu_custom_call.1} parent=71 // pred_fallthru
          _
        %s734 = smul.u32 %s43, 8
        %s735 = scalar_lea.vmem %s522, %s734 [#allocation4]
        %v736 = vld [vmem:[%s735] sm:$0xff]
        %v737 = vpack.c.bf16 %v736, %v736
        %v738 = vld [vmem:[#allocation7] sm:$0xf]
        %v739 = vld [vmem:[#allocation7 + $0x4] sm:$0xf]
        %v740 = vld [vmem:[#allocation7 + $0x8] sm:$0xf]
        %v741 = vld [vmem:[#allocation7 + $0xc] sm:$0xf]
        %v742 = vld [vmem:[#allocation7 + $0x10] sm:$0xf]
        %v743 = vld [vmem:[#allocation7 + $0x14] sm:$0xf]
        %v744 = vld [vmem:[#allocation7 + $0x18] sm:$0xf]
        %v745 = vld [vmem:[#allocation7 + $0x1c] sm:$0xf]
        %v746 = vld [vmem:[#allocation7 + $0x20] sm:$0xf]
        %v747 = vld [vmem:[#allocation7 + $0x24] sm:$0xf]
        %v748 = vld [vmem:[#allocation7 + $0x28] sm:$0xf]
        %v749 = vld [vmem:[#allocation7 + $0x2c] sm:$0xf]
        %v750 = vld [vmem:[#allocation7 + $0x30] sm:$0xf]
        %v751 = vld [vmem:[#allocation7 + $0x34] sm:$0xf]
        %v752 = vld [vmem:[#allocation7 + $0x38] sm:$0xf]
        %v753 = vld [vmem:[#allocation7 + $0x3c] sm:$0xf]
        %v770 = vunpack.c.l.b16 %v738
        %v771 = vunpack.c.l.b16 %v739
        %v772 = vunpack.c.l.b16 %v740
        %v773 = vunpack.c.l.b16 %v741
        %v774 = vunpack.c.l.b16 %v742
        %v775 = vunpack.c.l.b16 %v743
        %v776 = vunpack.c.l.b16 %v744
        %v777 = vunpack.c.l.b16 %v745
        %v778 = vunpack.c.l.b16 %v746
        %v779 = vunpack.c.l.b16 %v747
        %v780 = vunpack.c.l.b16 %v748
        %v781 = vunpack.c.l.b16 %v749
        %v782 = vunpack.c.l.b16 %v750
        %v783 = vunpack.c.l.b16 %v751
        %v784 = vunpack.c.l.b16 %v752
        %v785 = vunpack.c.l.b16 %v753
        %v786 = vpack.c.b16 %v771, %v770
        %v787 = vpack.c.b16 %v773, %v772
        %v788 = vpack.c.b16 %v775, %v774
        %v789 = vpack.c.b16 %v777, %v776
        %v790 = vpack.c.b16 %v779, %v778
        %v791 = vpack.c.b16 %v781, %v780
        %v792 = vpack.c.b16 %v783, %v782
        %v793 = vpack.c.b16 %v785, %v784
        %802 = vmatpush.bf16.msra.mxu0 %v793
        %803 = vmatpush.bf16.msra.mxu0 %v792
        %804 = vmatpush.bf16.msra.mxu0 %v791
        %805 = vmatpush.bf16.msra.mxu0 %v790
        %806 = vmatpush.bf16.msra.mxu0 %v789
        %807 = vmatpush.bf16.msra.mxu0 %v788
        %808 = vmatpush.bf16.msra.mxu0 %v787
        %809 = vmatpush.bf16.msra.mxu0 %v786
        %810 = vmatmul.bf16.gmra.mxu0 %v737
        %v811 = vpop.f32.mrf.mxu0
        %v812 = vadd.f32 0.0, %v811
        %v813 = vpop.f32.mrf.mxu0
        %814 = vdwg.mxu0
        %v815 = vmul.f32 %v812, 0.17677669
        %v816 = vpack.c.bf16 %v815, %v815
        %v817 = vld [vmem:[#allocation2] sm:$0xf]
        %v818 = vld [vmem:[#allocation2 + $0x8] sm:$0xf]
        %v821 = vunpack.c.l.b16 %v817
        %v822 = vunpack.c.l.b16 %v818
        %v823 = vpack.c.b16 %v822, %v821
        %vm824 = vcmask 261120
        %v826 = vsel %vm824, %v816, 0
        %v829 = vsel %vm824, %v823, 0
        %831 = vmatpush.bf16.xpose.msra.mxu0 0
        %832 = vmatpush.bf16.xpose.msra.mxu0 0
        %833 = vmatpush.bf16.xpose.msra.mxu0 0
        %834 = vmatpush.bf16.xpose.msra.mxu0 0
        %835 = vmatpush.bf16.xpose.msra.mxu0 0
        %836 = vmatpush.bf16.xpose.msra.mxu0 0
        %837 = vmatpush.bf16.xpose.msra.mxu0 0
        %838 = vmatpush.bf16.xpose.msra.mxu0 %v829
        %839 = vmatmul.bf16.gmra.mxu0 %v826
        %v840 = vpop.f32.mrf.mxu0
        %v841 = vadd.f32 0.0, %v840
        %v842 = vpop.f32.mrf.mxu0
        %843 = vdwg.mxu0
        %vm844 = vcmask 130048
        %v845 = vsel %vm844, %v841, -inf
        %846 = vmax.xlane.f32.xlu0 %v845
        %v847 = vpop.xlane.xlu0 %846
        %v848 = vsub.f32 %v841, %v847
        %v849 = vmul.f32 %v848, 1.442695
        %v850 = vpow.pop %v849
        %v851 = vsel %vm844, %v850, 0.0
        %852 = vadd.xlane.f32.xlu0 %v851
        %v853 = vpop.xlane.xlu0 %852
        %v854 = vrcp.pop %v853
        %v855 = vmul.f32 %v850, %v854
        %v856 = vpack.c.bf16 %v855, %v855
        %v857 = vld [vmem:[#allocation2 + $0x4] sm:$0xf]
        %v858 = vld [vmem:[#allocation2 + $0xc] sm:$0xf]
        %v861 = vunpack.c.l.b16 %v857
        %v862 = vunpack.c.l.b16 %v858
        %v863 = vpack.c.b16 %v862, %v861
        %v866 = vsel %vm844, %v856, 0
        %868 = vmatpush.bf16.msra.mxu0 0
        %869 = vmatpush.bf16.msra.mxu0 0
        %870 = vmatpush.bf16.msra.mxu0 0
        %871 = vmatpush.bf16.msra.mxu0 0
        %872 = vmatpush.bf16.msra.mxu0 0
        %873 = vmatpush.bf16.msra.mxu0 0
        %874 = vmatpush.bf16.msra.mxu0 0
        %875 = vmatpush.bf16.msra.mxu0 %v863
        %876 = vmatmul.bf16.gmra.mxu0 %v866
        %v877 = vpop.f32.mrf.mxu0
        %v878 = vadd.f32 0.0, %v877
        %v879 = vpop.f32.mrf.mxu0
        %880 = vdwg.mxu0
        %881 = vst.msk [vmem:[#allocation3] sm:$0xff] %vm824, %v878
        %v882 = vld [vmem:[#allocation2] sm:$0xf]
        %v883 = vld [vmem:[#allocation2 + $0x8] sm:$0xf]
        %v885 = vunpack.c.l.b16 %v816
        %v886 = vpack.c.b16 %v885, %v885
        %887 = vrot.lane.b32.xlu0 %v886, 96
        %v888 = vpop.permute.xlu0 %887
        %v891 = vunpack.c.l.b16 %v882
        %v892 = vunpack.c.l.b16 %v883
        %v893 = vpack.c.b16 %v892, %v891
        %894 = vrot.lane.b32.xlu0 %v893, 96
        %v895 = vpop.permute.xlu0 %894
        %v897 = vsel %vm824, %v888, 0
        %v900 = vsel %vm824, %v895, 0
        %902 = vmatpush.bf16.xpose.msra.mxu0 0
        %903 = vmatpush.bf16.xpose.msra.mxu0 0
        %904 = vmatpush.bf16.xpose.msra.mxu0 0
        %905 = vmatpush.bf16.xpose.msra.mxu0 0
        %906 = vmatpush.bf16.xpose.msra.mxu0 0
        %907 = vmatpush.bf16.xpose.msra.mxu0 0
        %908 = vmatpush.bf16.xpose.msra.mxu0 0
        %909 = vmatpush.bf16.xpose.msra.mxu0 %v900
        %910 = vmatmul.bf16.gmra.mxu0 %v897
        %v911 = vpop.f32.mrf.mxu0
        %v912 = vadd.f32 0.0, %v911
        %v913 = vpop.f32.mrf.mxu0
        %914 = vdwg.mxu0
        %v915 = vsel %vm844, %v912, -inf
        %916 = vmax.xlane.f32.xlu0 %v915
        %v917 = vpop.xlane.xlu0 %916
        %v918 = vsub.f32 %v912, %v917
        %v919 = vmul.f32 %v918, 1.442695
        %v920 = vpow.pop %v919
        %v921 = vsel %vm844, %v920, 0.0
        %922 = vadd.xlane.f32.xlu0 %v921
        %v923 = vpop.xlane.xlu0 %922
        %v924 = vrcp.pop %v923
        %v925 = vmul.f32 %v920, %v924
        %v926 = vpack.c.bf16 %v925, %v925
        %v927 = vld [vmem:[#allocation2 + $0x4] sm:$0xf]
        %v928 = vld [vmem:[#allocation2 + $0xc] sm:$0xf]
        %v931 = vunpack.c.l.b16 %v927
        %v932 = vunpack.c.l.b16 %v928
        %v933 = vpack.c.b16 %v932, %v931
        %934 = vrot.lane.b32.xlu0 %v933, 96
        %v935 = vpop.permute.xlu0 %934
        %v938 = vsel %vm844, %v926, 0
        %940 = vmatpush.bf16.msra.mxu0 0
        %941 = vmatpush.bf16.msra.mxu0 0
        %942 = vmatpush.bf16.msra.mxu0 0
        %943 = vmatpush.bf16.msra.mxu0 0
        %944 = vmatpush.bf16.msra.mxu0 0
        %945 = vmatpush.bf16.msra.mxu0 0
        %946 = vmatpush.bf16.msra.mxu0 0
        %947 = vmatpush.bf16.msra.mxu0 %v935
        %948 = vmatmul.bf16.gmra.mxu0 %v938
        %v949 = vpop.f32.mrf.mxu0
        %v950 = vadd.f32 0.0, %v949
        %v951 = vpop.f32.mrf.mxu0
        %952 = vdwg.mxu0
        %954 = vrot.lane.b32.xlu0 %v950, 32
        %v955 = vpop.permute.xlu0 %954
        %vm957 = vcmask 523520
        %958 = vst.msk [vmem:[#allocation3] sm:$0xff] %vm957, %v955
        %v959 = vld [vmem:[#allocation2] sm:$0xf]
        %v960 = vld [vmem:[#allocation2 + $0x8] sm:$0xf]
        %961 = vrot.lane.b32.xlu0 %v886, 64
        %v962 = vpop.permute.xlu0 %961
        %v965 = vunpack.c.l.b16 %v959
        %v966 = vunpack.c.l.b16 %v960
        %v967 = vpack.c.b16 %v966, %v965
        %968 = vrot.lane.b32.xlu0 %v967, 64
        %v969 = vpop.permute.xlu0 %968
        %v971 = vsel %vm824, %v962, 0
        %v974 = vsel %vm824, %v969, 0
        %976 = vmatpush.bf16.xpose.msra.mxu0 0
        %977 = vmatpush.bf16.xpose.msra.mxu0 0
        %978 = vmatpush.bf16.xpose.msra.mxu0 0
        %979 = vmatpush.bf16.xpose.msra.mxu0 0
        %980 = vmatpush.bf16.xpose.msra.mxu0 0
        %981 = vmatpush.bf16.xpose.msra.mxu0 0
        %982 = vmatpush.bf16.xpose.msra.mxu0 0
        %983 = vmatpush.bf16.xpose.msra.mxu0 %v974
        %984 = vmatmul.bf16.gmra.mxu0 %v971
        %v985 = vpop.f32.mrf.mxu0
        %v986 = vadd.f32 0.0, %v985
        %v987 = vpop.f32.mrf.mxu0
        %988 = vdwg.mxu0
        %v989 = vsel %vm844, %v986, -inf
        %990 = vmax.xlane.f32.xlu0 %v989
        %v991 = vpop.xlane.xlu0 %990
        %v992 = vsub.f32 %v986, %v991
        %v993 = vmul.f32 %v992, 1.442695
        %v994 = vpow.pop %v993
        %v995 = vsel %vm844, %v994, 0.0
        %996 = vadd.xlane.f32.xlu0 %v995
        %v997 = vpop.xlane.xlu0 %996
        %v998 = vrcp.pop %v997
        %v999 = vmul.f32 %v994, %v998
        %v1000 = vpack.c.bf16 %v999, %v999
        %v1001 = vld [vmem:[#allocation2 + $0x4] sm:$0xf]
        %v1002 = vld [vmem:[#allocation2 + $0xc] sm:$0xf]
        %v1005 = vunpack.c.l.b16 %v1001
        %v1006 = vunpack.c.l.b16 %v1002
        %v1007 = vpack.c.b16 %v1006, %v1005
        %1008 = vrot.lane.b32.xlu0 %v1007, 64
        %v1009 = vpop.permute.xlu0 %1008
        %v1012 = vsel %vm844, %v1000, 0
        %1014 = vmatpush.bf16.msra.mxu0 0
        %1015 = vmatpush.bf16.msra.mxu0 0
        %1016 = vmatpush.bf16.msra.mxu0 0
        %1017 = vmatpush.bf16.msra.mxu0 0
        %1018 = vmatpush.bf16.msra.mxu0 0
        %1019 = vmatpush.bf16.msra.mxu0 0
        %1020 = vmatpush.bf16.msra.mxu0 0
        %1021 = vmatpush.bf16.msra.mxu0 %v1009
        %1022 = vmatmul.bf16.gmra.mxu0 %v1012
        %v1023 = vpop.f32.mrf.mxu0
        %v1024 = vadd.f32 0.0, %v1023
        %v1025 = vpop.f32.mrf.mxu0
        %1026 = vdwg.mxu0
        %1028 = vrot.lane.b32.xlu0 %v1024, 64
        %v1029 = vpop.permute.xlu0 %1028
        %vm1031 = vcmask 785920
        %1032 = vst.msk [vmem:[#allocation3] sm:$0xff] %vm1031, %v1029
        %v1033 = vld [vmem:[#allocation2] sm:$0xf]
        %v1034 = vld [vmem:[#allocation2 + $0x8] sm:$0xf]
        %1035 = vrot.lane.b32.xlu0 %v886, 32
        %v1036 = vpop.permute.xlu0 %1035
        %v1039 = vunpack.c.l.b16 %v1033
        %v1040 = vunpack.c.l.b16 %v1034
        %v1041 = vpack.c.b16 %v1040, %v1039
        %1042 = vrot.lane.b32.xlu0 %v1041, 32
        %v1043 = vpop.permute.xlu0 %1042
        %v1045 = vsel %vm824, %v1036, 0
        %v1048 = vsel %vm824, %v1043, 0
        %1050 = vmatpush.bf16.xpose.msra.mxu0 0
        %1051 = vmatpush.bf16.xpose.msra.mxu0 0
        %1052 = vmatpush.bf16.xpose.msra.mxu0 0
        %1053 = vmatpush.bf16.xpose.msra.mxu0 0
        %1054 = vmatpush.bf16.xpose.msra.mxu0 0
        %1055 = vmatpush.bf16.xpose.msra.mxu0 0
        %1056 = vmatpush.bf16.xpose.msra.mxu0 0
        %1057 = vmatpush.bf16.xpose.msra.mxu0 %v1048
        %1058 = vmatmul.bf16.gmra.mxu0 %v1045
        %v1059 = vpop.f32.mrf.mxu0
        %v1060 = vadd.f32 0.0, %v1059
        %v1061 = vpop.f32.mrf.mxu0
        %1062 = vdwg.mxu0
        %v1063 = vsel %vm844, %v1060, -inf
        %1064 = vmax.xlane.f32.xlu0 %v1063
        %v1065 = vpop.xlane.xlu0 %1064
        %v1066 = vsub.f32 %v1060, %v1065
        %v1067 = vmul.f32 %v1066, 1.442695
        %v1068 = vpow.pop %v1067
        %v1069 = vsel %vm844, %v1068, 0.0
        %1070 = vadd.xlane.f32.xlu0 %v1069
        %v1071 = vpop.xlane.xlu0 %1070
        %v1072 = vrcp.pop %v1071
        %v1073 = vmul.f32 %v1068, %v1072
        %v1074 = vpack.c.bf16 %v1073, %v1073
        %v1075 = vld [vmem:[#allocation2 + $0x4] sm:$0xf]
        %v1076 = vld [vmem:[#allocation2 + $0xc] sm:$0xf]
        %v1079 = vunpack.c.l.b16 %v1075
        %v1080 = vunpack.c.l.b16 %v1076
        %v1081 = vpack.c.b16 %v1080, %v1079
        %1082 = vrot.lane.b32.xlu0 %v1081, 32
        %v1083 = vpop.permute.xlu0 %1082
        %v1086 = vsel %vm844, %v1074, 0
        %1088 = vmatpush.bf16.msra.mxu0 0
        %1089 = vmatpush.bf16.msra.mxu0 0
        %1090 = vmatpush.bf16.msra.mxu0 0
        %1091 = vmatpush.bf16.msra.mxu0 0
        %1092 = vmatpush.bf16.msra.mxu0 0
        %1093 = vmatpush.bf16.msra.mxu0 0
        %1094 = vmatpush.bf16.msra.mxu0 0
        %1095 = vmatpush.bf16.msra.mxu0 %v1083
        %1096 = vmatmul.bf16.gmra.mxu0 %v1086
        %v1097 = vpop.f32.mrf.mxu0
        %v1098 = vadd.f32 0.0, %v1097
        %v1099 = vpop.f32.mrf.mxu0
        %1100 = vdwg.mxu0
        %1102 = vrot.lane.b32.xlu0 %v1098, 96
        %v1103 = vpop.permute.xlu0 %1102
        %vm1105 = vcmask 1048320
        %1106 = vst.msk [vmem:[#allocation3] sm:$0xff] %vm1105, %v1103
        %v1107 = vld [vmem:[#allocation3] sm:$0xff]
        %v1108 = vpack.c.bf16 %v1107, %v1107
        %v1109 = vld [vmem:[#allocation10] sm:$0xf]
        %v1110 = vld [vmem:[#allocation10 + $0x4] sm:$0xf]
        %v1111 = vld [vmem:[#allocation10 + $0x8] sm:$0xf]
        %v1112 = vld [vmem:[#allocation10 + $0xc] sm:$0xf]
        %v1113 = vld [vmem:[#allocation10 + $0x10] sm:$0xf]
        %v1114 = vld [vmem:[#allocation10 + $0x14] sm:$0xf]
        %v1115 = vld [vmem:[#allocation10 + $0x18] sm:$0xf]
        %v1116 = vld [vmem:[#allocation10 + $0x1c] sm:$0xf]
        %v1117 = vld [vmem:[#allocation10 + $0x20] sm:$0xf]
        %v1118 = vld [vmem:[#allocation10 + $0x24] sm:$0xf]
        %v1119 = vld [vmem:[#allocation10 + $0x28] sm:$0xf]
        %v1120 = vld [vmem:[#allocation10 + $0x2c] sm:$0xf]
        %v1121 = vld [vmem:[#allocation10 + $0x30] sm:$0xf]
        %v1122 = vld [vmem:[#allocation10 + $0x34] sm:$0xf]
        %v1123 = vld [vmem:[#allocation10 + $0x38] sm:$0xf]
        %v1124 = vld [vmem:[#allocation10 + $0x3c] sm:$0xf]
        %v1125 = vld [vmem:[%s4] sm:$0x1]
        %v1127 = vperm.slane %v1125, 0
        %v1145 = vunpack.c.l.b16 %v1109
        %v1146 = vunpack.c.l.b16 %v1110
        %v1147 = vunpack.c.l.b16 %v1111
        %v1148 = vunpack.c.l.b16 %v1112
        %v1149 = vunpack.c.l.b16 %v1113
        %v1150 = vunpack.c.l.b16 %v1114
        %v1151 = vunpack.c.l.b16 %v1115
        %v1152 = vunpack.c.l.b16 %v1116
        %v1153 = vunpack.c.l.b16 %v1117
        %v1154 = vunpack.c.l.b16 %v1118
        %v1155 = vunpack.c.l.b16 %v1119
        %v1156 = vunpack.c.l.b16 %v1120
        %v1157 = vunpack.c.l.b16 %v1121
        %v1158 = vunpack.c.l.b16 %v1122
        %v1159 = vunpack.c.l.b16 %v1123
        %v1160 = vunpack.c.l.b16 %v1124
        %v1161 = vpack.c.b16 %v1146, %v1145
        %v1162 = vpack.c.b16 %v1148, %v1147
        %v1163 = vpack.c.b16 %v1150, %v1149
        %v1164 = vpack.c.b16 %v1152, %v1151
        %v1165 = vpack.c.b16 %v1154, %v1153
        %v1166 = vpack.c.b16 %v1156, %v1155
        %v1167 = vpack.c.b16 %v1158, %v1157
        %v1168 = vpack.c.b16 %v1160, %v1159
        %1177 = vmatpush.bf16.msra.mxu0 %v1168
        %1178 = vmatpush.bf16.msra.mxu0 %v1167
        %1179 = vmatpush.bf16.msra.mxu0 %v1166
        %1180 = vmatpush.bf16.msra.mxu0 %v1165
        %1181 = vmatpush.bf16.msra.mxu0 %v1164
        %1182 = vmatpush.bf16.msra.mxu0 %v1163
        %1183 = vmatpush.bf16.msra.mxu0 %v1162
        %1184 = vmatpush.bf16.msra.mxu0 %v1161
        %1185 = vmatmul.bf16.gmra.mxu0 %v1108
        %v1186 = vpop.f32.mrf.mxu0
        %v1187 = vadd.f32 %v1127, %v1186
        %v1188 = vpop.f32.mrf.mxu0
        %1189 = vdwg.mxu0
        %v1190 = vadd.f32 %v736, %v1187
        %v1191 = vld [vmem:[%s5] sm:$0x1]
        %v1192 = vld [vmem:[%s6] sm:$0x1]
        %1193 = vadd.xlane.f32.xlu0 %v1190
        %v1194 = vpop.xlane.xlu0 %1193
        %v1195 = vmul.f32 %v1190, %v1190
        %1196 = vadd.xlane.f32.xlu0 %v1195
        %v1197 = vpop.xlane.xlu0 %1196
        %v1198 = vmul.f32 %v1194, 0.0078125
        %v1199 = vmul.f32 %v1197, 0.0078125
        %v1200 = vmul.f32 %v1198, %v1198
        %v1201 = vsub.f32 %v1199, %v1200
        %v1202 = vsub.f32 %v1190, %v1198
        %v1203 = vadd.f32 %v1201, 1e-05
        %v1204 = vrsqrt.pop %v1203
        %v1205 = vmul.f32 %v1204, %v1203
        %v1206 = vmul.f32 %v1205, %v1204
        %v1207 = vmul.f32 0.5, %v1206
        %v1208 = vsub.f32 1.5, %v1207
        %v1209 = vmul.f32 %v1204, %v1208
        %vm1210 = vweird.f32 %v1203
        %vm1211 = vweird.f32 %v1204
        %vm1212 = vmor %vm1210, %vm1211
        %v1213 = vsel %vm1212, %v1204, %v1209
        %v1214 = vmul.f32 %v1202, %v1213
        %v1216 = vperm.slane %v1191, 0
        %v1218 = vmul.f32 %v1214, %v1216
        %v1220 = vperm.slane %v1192, 0
        %v1222 = vadd.f32 %v1218, %v1220
        %v1223 = vpack.c.bf16 %v1222, %v1222
        %v1224 = vld [vmem:[#allocation12] sm:$0xff]
        %v1225 = vld [vmem:[#allocation12 + $0x8] sm:$0xff]
        %v1226 = vld [vmem:[#allocation12 + $0x10] sm:$0xff]
        %v1227 = vld [vmem:[#allocation12 + $0x18] sm:$0xff]
        %v1228 = vld [vmem:[#allocation12 + $0x20] sm:$0xff]
        %v1229 = vld [vmem:[#allocation12 + $0x28] sm:$0xff]
        %v1230 = vld [vmem:[#allocation12 + $0x30] sm:$0xff]
        %v1231 = vld [vmem:[#allocation12 + $0x38] sm:$0xff]
        %v1232 = vld [vmem:[#allocation12 + $0x40] sm:$0xff]
        %v1233 = vld [vmem:[#allocation12 + $0x48] sm:$0xff]
        %v1234 = vld [vmem:[#allocation12 + $0x50] sm:$0xff]
        %v1235 = vld [vmem:[#allocation12 + $0x58] sm:$0xff]
        %v1236 = vld [vmem:[#allocation12 + $0x60] sm:$0xff]
        %v1237 = vld [vmem:[#allocation12 + $0x68] sm:$0xff]
        %v1238 = vld [vmem:[#allocation12 + $0x70] sm:$0xff]
        %v1239 = vld [vmem:[#allocation12 + $0x78] sm:$0xff]
        %v1240 = vld [vmem:[#allocation12 + $0x80] sm:$0xff]
        %v1241 = vld [vmem:[#allocation12 + $0x88] sm:$0xff]
        %v1242 = vld [vmem:[#allocation12 + $0x90] sm:$0xff]
        %v1243 = vld [vmem:[#allocation12 + $0x98] sm:$0xff]
        %v1244 = vld [vmem:[#allocation12 + $0xa0] sm:$0xff]
        %v1245 = vld [vmem:[#allocation12 + $0xa8] sm:$0xff]
        %v1246 = vld [vmem:[#allocation12 + $0xb0] sm:$0xff]
        %v1247 = vld [vmem:[#allocation12 + $0xb8] sm:$0xff]
        %v1248 = vld [vmem:[#allocation12 + $0xc0] sm:$0xff]
        %v1249 = vld [vmem:[#allocation12 + $0xc8] sm:$0xff]
        %v1250 = vld [vmem:[#allocation12 + $0xd0] sm:$0xff]
        %v1251 = vld [vmem:[#allocation12 + $0xd8] sm:$0xff]
        %v1252 = vld [vmem:[#allocation12 + $0xe0] sm:$0xff]
        %v1253 = vld [vmem:[#allocation12 + $0xe8] sm:$0xff]
        %v1254 = vld [vmem:[#allocation12 + $0xf0] sm:$0xff]
        %v1255 = vld [vmem:[#allocation12 + $0xf8] sm:$0xff]
        %v1256 = vld [vmem:[%s8] sm:$0xf]
        %v1258 = vperm.slane %v1256, 0
        %v1259 = vperm.slane %v1256, 1
        %v1260 = vperm.slane %v1256, 2
        %v1261 = vperm.slane %v1256, 3
        %v1298 = vunpack.c.l.b16 %v1224
        %v1299 = vunpack.c.h.b16 %v1224
        %v1300 = vunpack.c.l.b16 %v1225
        %v1301 = vunpack.c.h.b16 %v1225
        %v1302 = vunpack.c.l.b16 %v1226
        %v1303 = vunpack.c.h.b16 %v1226
        %v1304 = vunpack.c.l.b16 %v1227
        %v1305 = vunpack.c.h.b16 %v1227
        %v1306 = vunpack.c.l.b16 %v1228
        %v1307 = vunpack.c.h.b16 %v1228
        %v1308 = vunpack.c.l.b16 %v1229
        %v1309 = vunpack.c.h.b16 %v1229
        %v1310 = vunpack.c.l.b16 %v1230
        %v1311 = vunpack.c.h.b16 %v1230
        %v1312 = vunpack.c.l.b16 %v1231
        %v1313 = vunpack.c.h.b16 %v1231
        %v1314 = vunpack.c.l.b16 %v1232
        %v1315 = vunpack.c.h.b16 %v1232
        %v1316 = vunpack.c.l.b16 %v1233
        %v1317 = vunpack.c.h.b16 %v1233
        %v1318 = vunpack.c.l.b16 %v1234
        %v1319 = vunpack.c.h.b16 %v1234
        %v1320 = vunpack.c.l.b16 %v1235
        %v1321 = vunpack.c.h.b16 %v1235
        %v1322 = vunpack.c.l.b16 %v1236
        %v1323 = vunpack.c.h.b16 %v1236
        %v1324 = vunpack.c.l.b16 %v1237
        %v1325 = vunpack.c.h.b16 %v1237
        %v1326 = vunpack.c.l.b16 %v1238
        %v1327 = vunpack.c.h.b16 %v1238
        %v1328 = vunpack.c.l.b16 %v1239
        %v1329 = vunpack.c.h.b16 %v1239
        %v1330 = vunpack.c.l.b16 %v1240
        %v1331 = vunpack.c.h.b16 %v1240
        %v1332 = vunpack.c.l.b16 %v1241
        %v1333 = vunpack.c.h.b16 %v1241
        %v1334 = vunpack.c.l.b16 %v1242
        %v1335 = vunpack.c.h.b16 %v1242
        %v1336 = vunpack.c.l.b16 %v1243
        %v1337 = vunpack.c.h.b16 %v1243
        %v1338 = vunpack.c.l.b16 %v1244
        %v1339 = vunpack.c.h.b16 %v1244
        %v1340 = vunpack.c.l.b16 %v1245
        %v1341 = vunpack.c.h.b16 %v1245
        %v1342 = vunpack.c.l.b16 %v1246
        %v1343 = vunpack.c.h.b16 %v1246
        %v1344 = vunpack.c.l.b16 %v1247
        %v1345 = vunpack.c.h.b16 %v1247
        %v1346 = vunpack.c.l.b16 %v1248
        %v1347 = vunpack.c.h.b16 %v1248
        %v1348 = vunpack.c.l.b16 %v1249
        %v1349 = vunpack.c.h.b16 %v1249
        %v1350 = vunpack.c.l.b16 %v1250
        %v1351 = vunpack.c.h.b16 %v1250
        %v1352 = vunpack.c.l.b16 %v1251
        %v1353 = vunpack.c.h.b16 %v1251
        %v1354 = vunpack.c.l.b16 %v1252
        %v1355 = vunpack.c.h.b16 %v1252
        %v1356 = vunpack.c.l.b16 %v1253
        %v1357 = vunpack.c.h.b16 %v1253
        %v1358 = vunpack.c.l.b16 %v1254
        %v1359 = vunpack.c.h.b16 %v1254
        %v1360 = vunpack.c.l.b16 %v1255
        %v1361 = vunpack.c.h.b16 %v1255
        %v1362 = vpack.c.b16 %v1302, %v1298
        %v1363 = vpack.c.b16 %v1303, %v1299
        %v1364 = vpack.c.b16 %v1304, %v1300
        %v1365 = vpack.c.b16 %v1305, %v1301
        %v1366 = vpack.c.b16 %v1310, %v1306
        %v1367 = vpack.c.b16 %v1311, %v1307
        %v1368 = vpack.c.b16 %v1312, %v1308
        %v1369 = vpack.c.b16 %v1313, %v1309
        %v1370 = vpack.c.b16 %v1318, %v1314
        %v1371 = vpack.c.b16 %v1319, %v1315
        %v1372 = vpack.c.b16 %v1320, %v1316
        %v1373 = vpack.c.b16 %v1321, %v1317
        %v1374 = vpack.c.b16 %v1326, %v1322
        %v1375 = vpack.c.b16 %v1327, %v1323
        %v1376 = vpack.c.b16 %v1328, %v1324
        %v1377 = vpack.c.b16 %v1329, %v1325
        %v1378 = vpack.c.b16 %v1334, %v1330
        %v1379 = vpack.c.b16 %v1335, %v1331
        %v1380 = vpack.c.b16 %v1336, %v1332
        %v1381 = vpack.c.b16 %v1337, %v1333
        %v1382 = vpack.c.b16 %v1342, %v1338
        %v1383 = vpack.c.b16 %v1343, %v1339
        %v1384 = vpack.c.b16 %v1344, %v1340
        %v1385 = vpack.c.b16 %v1345, %v1341
        %v1386 = vpack.c.b16 %v1350, %v1346
        %v1387 = vpack.c.b16 %v1351, %v1347
        %v1388 = vpack.c.b16 %v1352, %v1348
        %v1389 = vpack.c.b16 %v1353, %v1349
        %v1390 = vpack.c.b16 %v1358, %v1354
        %v1391 = vpack.c.b16 %v1359, %v1355
        %v1392 = vpack.c.b16 %v1360, %v1356
        %v1393 = vpack.c.b16 %v1361, %v1357
        %1426 = vmatpush.bf16.msra.mxu0 %v1390
        %1427 = vmatpush.bf16.msra.mxu0 %v1386
        %1428 = vmatpush.bf16.msra.mxu0 %v1382
        %1429 = vmatpush.bf16.msra.mxu0 %v1378
        %1430 = vmatpush.bf16.msra.mxu0 %v1374
        %1431 = vmatpush.bf16.msra.mxu0 %v1370
        %1432 = vmatpush.bf16.msra.mxu0 %v1366
        %1433 = vmatpush.bf16.msra.mxu0 %v1362
        %1434 = vmatmul.bf16.gmra.mxu0 %v1223
        %v1435 = vpop.f32.mrf.mxu0
        %v1436 = vadd.f32 %v1258, %v1435
        %v1437 = vpop.f32.mrf.mxu0
        %1438 = vdwg.mxu0
        %1439 = vmatpush.bf16.msra.mxu0 %v1391
        %1440 = vmatpush.bf16.msra.mxu0 %v1387
        %1441 = vmatpush.bf16.msra.mxu0 %v1383
        %1442 = vmatpush.bf16.msra.mxu0 %v1379
        %1443 = vmatpush.bf16.msra.mxu0 %v1375
        %1444 = vmatpush.bf16.msra.mxu0 %v1371
        %1445 = vmatpush.bf16.msra.mxu0 %v1367
        %1446 = vmatpush.bf16.msra.mxu0 %v1363
        %1447 = vmatmul.bf16.gmra.mxu0 %v1223
        %v1448 = vpop.f32.mrf.mxu0
        %v1449 = vadd.f32 %v1259, %v1448
        %v1450 = vpop.f32.mrf.mxu0
        %1451 = vdwg.mxu0
        %1452 = vmatpush.bf16.msra.mxu0 %v1392
        %1453 = vmatpush.bf16.msra.mxu0 %v1388
        %1454 = vmatpush.bf16.msra.mxu0 %v1384
        %1455 = vmatpush.bf16.msra.mxu0 %v1380
        %1456 = vmatpush.bf16.msra.mxu0 %v1376
        %1457 = vmatpush.bf16.msra.mxu0 %v1372
        %1458 = vmatpush.bf16.msra.mxu0 %v1368
        %1459 = vmatpush.bf16.msra.mxu0 %v1364
        %1460 = vmatmul.bf16.gmra.mxu0 %v1223
        %v1461 = vpop.f32.mrf.mxu0
        %v1462 = vadd.f32 %v1260, %v1461
        %v1463 = vpop.f32.mrf.mxu0
        %1464 = vdwg.mxu0
        %1465 = vmatpush.bf16.msra.mxu0 %v1393
        %1466 = vmatpush.bf16.msra.mxu0 %v1389
        %1467 = vmatpush.bf16.msra.mxu0 %v1385
        %1468 = vmatpush.bf16.msra.mxu0 %v1381
        %1469 = vmatpush.bf16.msra.mxu0 %v1377
        %1470 = vmatpush.bf16.msra.mxu0 %v1373
        %1471 = vmatpush.bf16.msra.mxu0 %v1369
        %1472 = vmatpush.bf16.msra.mxu0 %v1365
        %1473 = vmatmul.bf16.gmra.mxu0 %v1223
        %v1474 = vpop.f32.mrf.mxu0
        %v1475 = vadd.f32 %v1261, %v1474
        %v1476 = vpop.f32.mrf.mxu0
        %1477 = vdwg.mxu0
        %v1478 = vmul.f32 %v1436, 0.5
        %v1479 = vmul.f32 %v1449, 0.5
        %v1480 = vmul.f32 %v1462, 0.5
        %v1481 = vmul.f32 %v1475, 0.5
        %v1482 = vmul.f32 %v1436, 0.70710677
        %v1483 = vmul.f32 %v1449, 0.70710677
        %v1484 = vmul.f32 %v1462, 0.70710677
        %v1485 = vmul.f32 %v1475, 0.70710677
        %v1486 = vand.u32 2147483647, %v1482
        %v1487 = vand.u32 2147483647, %v1483
        %v1488 = vand.u32 2147483647, %v1484
        %v1489 = vand.u32 2147483647, %v1485
        %v1490 = vmul.f32 %v1486, 0.3275911
        %v1491 = vmul.f32 %v1487, 0.3275911
        %v1492 = vmul.f32 %v1488, 0.3275911
        %v1493 = vmul.f32 %v1489, 0.3275911
        %v1494 = vadd.f32 %v1490, 1.0
        %v1495 = vadd.f32 %v1491, 1.0
        %v1496 = vadd.f32 %v1492, 1.0
        %v1497 = vadd.f32 %v1493, 1.0
        %v1498 = vrcp.pop %v1494
        %v1499 = vmul.f32 %v1494, %v1498
        %v1500 = vsub.f32 1.0, %v1499
        %v1501 = vmul.f32 %v1498, %v1500
        %v1502 = vadd.f32 %v1498, %v1501
        %vm1503 = vweird.f32 %v1494
        %vm1504 = vweird.f32 %v1498
        %vm1505 = vmor %vm1503, %vm1504
        %v1506 = vsel %vm1505, %v1498, %v1502
        %v1507 = vand.u32 2147483647, %v1494
        %vm1508 = vcmp.eq.f32.partialorder %v1507, 8.507059e+37
        %v1509 = vand.u32 %v1494, 2147483648
        %v1510 = vor.u32 1.1754944e-38, %v1509
        %v1511 = vsel %vm1508, %v1510, %v1506
        %v1512 = vmul.f32 1.0, %v1511
        %v1513 = vrcp.pop %v1495
        %v1514 = vmul.f32 %v1495, %v1513
        %v1515 = vsub.f32 1.0, %v1514
        %v1516 = vmul.f32 %v1513, %v1515
        %v1517 = vadd.f32 %v1513, %v1516
        %vm1518 = vweird.f32 %v1495
        %vm1519 = vweird.f32 %v1513
        %vm1520 = vmor %vm1518, %vm1519
        %v1521 = vsel %vm1520, %v1513, %v1517
        %v1522 = vand.u32 2147483647, %v1495
        %vm1523 = vcmp.eq.f32.partialorder %v1522, 8.507059e+37
        %v1524 = vand.u32 %v1495, 2147483648
        %v1525 = vor.u32 1.1754944e-38, %v1524
        %v1526 = vsel %vm1523, %v1525, %v1521
        %v1527 = vmul.f32 1.0, %v1526
        %v1528 = vrcp.pop %v1496
        %v1529 = vmul.f32 %v1496, %v1528
        %v1530 = vsub.f32 1.0, %v1529
        %v1531 = vmul.f32 %v1528, %v1530
        %v1532 = vadd.f32 %v1528, %v1531
        %vm1533 = vweird.f32 %v1496
        %vm1534 = vweird.f32 %v1528
        %vm1535 = vmor %vm1533, %vm1534
        %v1536 = vsel %vm1535, %v1528, %v1532
        %v1537 = vand.u32 2147483647, %v1496
        %vm1538 = vcmp.eq.f32.partialorder %v1537, 8.507059e+37
        %v1539 = vand.u32 %v1496, 2147483648
        %v1540 = vor.u32 1.1754944e-38, %v1539
        %v1541 = vsel %vm1538, %v1540, %v1536
        %v1542 = vmul.f32 1.0, %v1541
        %v1543 = vrcp.pop %v1497
        %v1544 = vmul.f32 %v1497, %v1543
        %v1545 = vsub.f32 1.0, %v1544
        %v1546 = vmul.f32 %v1543, %v1545
        %v1547 = vadd.f32 %v1543, %v1546
        %vm1548 = vweird.f32 %v1497
        %vm1549 = vweird.f32 %v1543
        %vm1550 = vmor %vm1548, %vm1549
        %v1551 = vsel %vm1550, %v1543, %v1547
        %v1552 = vand.u32 2147483647, %v1497
        %vm1553 = vcmp.eq.f32.partialorder %v1552, 8.507059e+37
        %v1554 = vand.u32 %v1497, 2147483648
        %v1555 = vor.u32 1.1754944e-38, %v1554
        %v1556 = vsel %vm1553, %v1555, %v1551
        %v1557 = vmul.f32 1.0, %v1556
        %v1558 = vmul.f32 %v1512, 1.0614054
        %v1559 = vmul.f32 %v1527, 1.0614054
        %v1560 = vmul.f32 %v1542, 1.0614054
        %v1561 = vmul.f32 %v1557, 1.0614054
        %v1562 = vadd.f32 %v1558, -1.4531521
        %v1563 = vadd.f32 %v1559, -1.4531521
        %v1564 = vadd.f32 %v1560, -1.4531521
        %v1565 = vadd.f32 %v1561, -1.4531521
        %v1566 = vmul.f32 %v1562, %v1512
        %v1567 = vmul.f32 %v1563, %v1527
        %v1568 = vmul.f32 %v1564, %v1542
        %v1569 = vmul.f32 %v1565, %v1557
        %v1570 = vadd.f32 %v1566, 1.4214138
        %v1571 = vadd.f32 %v1567, 1.4214138
        %v1572 = vadd.f32 %v1568, 1.4214138
        %v1573 = vadd.f32 %v1569, 1.4214138
        %v1574 = vmul.f32 %v1570, %v1512
        %v1575 = vmul.f32 %v1571, %v1527
        %v1576 = vmul.f32 %v1572, %v1542
        %v1577 = vmul.f32 %v1573, %v1557
        %v1578 = vadd.f32 %v1574, -0.28449672
        %v1579 = vadd.f32 %v1575, -0.28449672
        %v1580 = vadd.f32 %v1576, -0.28449672
        %v1581 = vadd.f32 %v1577, -0.28449672
        %v1582 = vmul.f32 %v1578, %v1512
        %v1583 = vmul.f32 %v1579, %v1527
        %v1584 = vmul.f32 %v1580, %v1542
        %v1585 = vmul.f32 %v1581, %v1557
        %v1586 = vadd.f32 %v1582, 0.2548296
        %v1587 = vadd.f32 %v1583, 0.2548296
        %v1588 = vadd.f32 %v1584, 0.2548296
        %v1589 = vadd.f32 %v1585, 0.2548296
        %v1590 = vmul.f32 %v1586, %v1512
        %v1591 = vmul.f32 %v1587, %v1527
        %v1592 = vmul.f32 %v1588, %v1542
        %v1593 = vmul.f32 %v1589, %v1557
        %v1594 = vsub.f32 0.0, %v1486
        %v1595 = vsub.f32 0.0, %v1487
        %v1596 = vsub.f32 0.0, %v1488
        %v1597 = vsub.f32 0.0, %v1489
        %v1598 = vmul.f32 %v1594, %v1486
        %v1599 = vmul.f32 %v1595, %v1487
        %v1600 = vmul.f32 %v1596, %v1488
        %v1601 = vmul.f32 %v1597, %v1489
        %v1602 = vmul.f32 %v1598, 1.442695
        %v1603 = vpow.pop %v1602
        %v1604 = vmul.f32 %v1599, 1.442695
        %v1605 = vpow.pop %v1604
        %v1606 = vmul.f32 %v1600, 1.442695
        %v1607 = vpow.pop %v1606
        %v1608 = vmul.f32 %v1601, 1.442695
        %v1609 = vpow.pop %v1608
        %v1610 = vmul.f32 %v1590, %v1603
        %v1611 = vmul.f32 %v1591, %v1605
        %v1612 = vmul.f32 %v1592, %v1607
        %v1613 = vmul.f32 %v1593, %v1609
        %v1614 = vsub.f32 1.0, %v1610
        %v1615 = vsub.f32 1.0, %v1611
        %v1616 = vsub.f32 1.0, %v1612
        %v1617 = vsub.f32 1.0, %v1613
        %vm1618 = vcmp.ge.f32.partialorder %v1482, 0.0
        %vm1619 = vcmp.ge.f32.partialorder %v1483, 0.0
        %vm1620 = vcmp.ge.f32.partialorder %v1484, 0.0
        %vm1621 = vcmp.ge.f32.partialorder %v1485, 0.0
        %v1622 = vsub.f32 0.0, %v1614
        %v1623 = vsub.f32 0.0, %v1615
        %v1624 = vsub.f32 0.0, %v1616
        %v1625 = vsub.f32 0.0, %v1617
        %v1626 = vsel %vm1618, %v1614, %v1622
        %v1627 = vsel %vm1619, %v1615, %v1623
        %v1628 = vsel %vm1620, %v1616, %v1624
        %v1629 = vsel %vm1621, %v1617, %v1625
        %v1630 = vadd.f32 %v1626, 1.0
        %v1631 = vadd.f32 %v1627, 1.0
        %v1632 = vadd.f32 %v1628, 1.0
        %v1633 = vadd.f32 %v1629, 1.0
        %v1634 = vmul.f32 %v1478, %v1630
        %v1635 = vmul.f32 %v1479, %v1631
        %v1636 = vmul.f32 %v1480, %v1632
        %v1637 = vmul.f32 %v1481, %v1633
        %v1638 = vpack.c.bf16 %v1634, %v1634
        %v1639 = vpack.c.bf16 %v1635, %v1635
        %v1640 = vpack.c.bf16 %v1636, %v1636
        %v1641 = vpack.c.bf16 %v1637, %v1637
        %v1642 = vld [vmem:[#allocation13] sm:$0xf]
        %v1643 = vld [vmem:[#allocation13 + $0x4] sm:$0xf]
        %v1644 = vld [vmem:[#allocation13 + $0x8] sm:$0xf]
        %v1645 = vld [vmem:[#allocation13 + $0xc] sm:$0xf]
        %v1646 = vld [vmem:[#allocation13 + $0x10] sm:$0xf]
        %v1647 = vld [vmem:[#allocation13 + $0x14] sm:$0xf]
        %v1648 = vld [vmem:[#allocation13 + $0x18] sm:$0xf]
        %v1649 = vld [vmem:[#allocation13 + $0x1c] sm:$0xf]
        %v1650 = vld [vmem:[#allocation13 + $0x20] sm:$0xf]
        %v1651 = vld [vmem:[#allocation13 + $0x24] sm:$0xf]
        %v1652 = vld [vmem:[#allocation13 + $0x28] sm:$0xf]
        %v1653 = vld [vmem:[#allocation13 + $0x2c] sm:$0xf]
        %v1654 = vld [vmem:[#allocation13 + $0x30] sm:$0xf]
        %v1655 = vld [vmem:[#allocation13 + $0x34] sm:$0xf]
        %v1656 = vld [vmem:[#allocation13 + $0x38] sm:$0xf]
        %v1657 = vld [vmem:[#allocation13 + $0x3c] sm:$0xf]
        %v1658 = vld [vmem:[#allocation13 + $0x40] sm:$0xf]
        %v1659 = vld [vmem:[#allocation13 + $0x44] sm:$0xf]
        %v1660 = vld [vmem:[#allocation13 + $0x48] sm:$0xf]
        %v1661 = vld [vmem:[#allocation13 + $0x4c] sm:$0xf]
        %v1662 = vld [vmem:[#allocation13 + $0x50] sm:$0xf]
        %v1663 = vld [vmem:[#allocation13 + $0x54] sm:$0xf]
        %v1664 = vld [vmem:[#allocation13 + $0x58] sm:$0xf]
        %v1665 = vld [vmem:[#allocation13 + $0x5c] sm:$0xf]
        %v1666 = vld [vmem:[#allocation13 + $0x60] sm:$0xf]
        %v1667 = vld [vmem:[#allocation13 + $0x64] sm:$0xf]
        %v1668 = vld [vmem:[#allocation13 + $0x68] sm:$0xf]
        %v1669 = vld [vmem:[#allocation13 + $0x6c] sm:$0xf]
        %v1670 = vld [vmem:[#allocation13 + $0x70] sm:$0xf]
        %v1671 = vld [vmem:[#allocation13 + $0x74] sm:$0xf]
        %v1672 = vld [vmem:[#allocation13 + $0x78] sm:$0xf]
        %v1673 = vld [vmem:[#allocation13 + $0x7c] sm:$0xf]
        %v1674 = vld [vmem:[#allocation13 + $0x80] sm:$0xf]
        %v1675 = vld [vmem:[#allocation13 + $0x84] sm:$0xf]
        %v1676 = vld [vmem:[#allocation13 + $0x88] sm:$0xf]
        %v1677 = vld [vmem:[#allocation13 + $0x8c] sm:$0xf]
        %v1678 = vld [vmem:[#allocation13 + $0x90] sm:$0xf]
        %v1679 = vld [vmem:[#allocation13 + $0x94] sm:$0xf]
        %v1680 = vld [vmem:[#allocation13 + $0x98] sm:$0xf]
        %v1681 = vld [vmem:[#allocation13 + $0x9c] sm:$0xf]
        %v1682 = vld [vmem:[#allocation13 + $0xa0] sm:$0xf]
        %v1683 = vld [vmem:[#allocation13 + $0xa4] sm:$0xf]
        %v1684 = vld [vmem:[#allocation13 + $0xa8] sm:$0xf]
        %v1685 = vld [vmem:[#allocation13 + $0xac] sm:$0xf]
        %v1686 = vld [vmem:[#allocation13 + $0xb0] sm:$0xf]
        %v1687 = vld [vmem:[#allocation13 + $0xb4] sm:$0xf]
        %v1688 = vld [vmem:[#allocation13 + $0xb8] sm:$0xf]
        %v1689 = vld [vmem:[#allocation13 + $0xbc] sm:$0xf]
        %v1690 = vld [vmem:[#allocation13 + $0xc0] sm:$0xf]
        %v1691 = vld [vmem:[#allocation13 + $0xc4] sm:$0xf]
        %v1692 = vld [vmem:[#allocation13 + $0xc8] sm:$0xf]
        %v1693 = vld [vmem:[#allocation13 + $0xcc] sm:$0xf]
        %v1694 = vld [vmem:[#allocation13 + $0xd0] sm:$0xf]
        %v1695 = vld [vmem:[#allocation13 + $0xd4] sm:$0xf]
        %v1696 = vld [vmem:[#allocation13 + $0xd8] sm:$0xf]
        %v1697 = vld [vmem:[#allocation13 + $0xdc] sm:$0xf]
        %v1698 = vld [vmem:[#allocation13 + $0xe0] sm:$0xf]
        %v1699 = vld [vmem:[#allocation13 + $0xe4] sm:$0xf]
        %v1700 = vld [vmem:[#allocation13 + $0xe8] sm:$0xf]
        %v1701 = vld [vmem:[#allocation13 + $0xec] sm:$0xf]
        %v1702 = vld [vmem:[#allocation13 + $0xf0] sm:$0xf]
        %v1703 = vld [vmem:[#allocation13 + $0xf4] sm:$0xf]
        %v1704 = vld [vmem:[#allocation13 + $0xf8] sm:$0xf]
        %v1705 = vld [vmem:[#allocation13 + $0xfc] sm:$0xf]
        %v1706 = vld [vmem:[%s10] sm:$0x1]
        %v1708 = vperm.slane %v1706, 0
        %v1774 = vunpack.c.l.b16 %v1642
        %v1775 = vunpack.c.l.b16 %v1643
        %v1776 = vunpack.c.l.b16 %v1644
        %v1777 = vunpack.c.l.b16 %v1645
        %v1778 = vunpack.c.l.b16 %v1646
        %v1779 = vunpack.c.l.b16 %v1647
        %v1780 = vunpack.c.l.b16 %v1648
        %v1781 = vunpack.c.l.b16 %v1649
        %v1782 = vunpack.c.l.b16 %v1650
        %v1783 = vunpack.c.l.b16 %v1651
        %v1784 = vunpack.c.l.b16 %v1652
        %v1785 = vunpack.c.l.b16 %v1653
        %v1786 = vunpack.c.l.b16 %v1654
        %v1787 = vunpack.c.l.b16 %v1655
        %v1788 = vunpack.c.l.b16 %v1656
        %v1789 = vunpack.c.l.b16 %v1657
        %v1790 = vunpack.c.l.b16 %v1658
        %v1791 = vunpack.c.l.b16 %v1659
        %v1792 = vunpack.c.l.b16 %v1660
        %v1793 = vunpack.c.l.b16 %v1661
        %v1794 = vunpack.c.l.b16 %v1662
        %v1795 = vunpack.c.l.b16 %v1663
        %v1796 = vunpack.c.l.b16 %v1664
        %v1797 = vunpack.c.l.b16 %v1665
        %v1798 = vunpack.c.l.b16 %v1666
        %v1799 = vunpack.c.l.b16 %v1667
        %v1800 = vunpack.c.l.b16 %v1668
        %v1801 = vunpack.c.l.b16 %v1669
        %v1802 = vunpack.c.l.b16 %v1670
        %v1803 = vunpack.c.l.b16 %v1671
        %v1804 = vunpack.c.l.b16 %v1672
        %v1805 = vunpack.c.l.b16 %v1673
        %v1806 = vunpack.c.l.b16 %v1674
        %v1807 = vunpack.c.l.b16 %v1675
        %v1808 = vunpack.c.l.b16 %v1676
        %v1809 = vunpack.c.l.b16 %v1677
        %v1810 = vunpack.c.l.b16 %v1678
        %v1811 = vunpack.c.l.b16 %v1679
        %v1812 = vunpack.c.l.b16 %v1680
        %v1813 = vunpack.c.l.b16 %v1681
        %v1814 = vunpack.c.l.b16 %v1682
        %v1815 = vunpack.c.l.b16 %v1683
        %v1816 = vunpack.c.l.b16 %v1684
        %v1817 = vunpack.c.l.b16 %v1685
        %v1818 = vunpack.c.l.b16 %v1686
        %v1819 = vunpack.c.l.b16 %v1687
        %v1820 = vunpack.c.l.b16 %v1688
        %v1821 = vunpack.c.l.b16 %v1689
        %v1822 = vunpack.c.l.b16 %v1690
        %v1823 = vunpack.c.l.b16 %v1691
        %v1824 = vunpack.c.l.b16 %v1692
        %v1825 = vunpack.c.l.b16 %v1693
        %v1826 = vunpack.c.l.b16 %v1694
        %v1827 = vunpack.c.l.b16 %v1695
        %v1828 = vunpack.c.l.b16 %v1696
        %v1829 = vunpack.c.l.b16 %v1697
        %v1830 = vunpack.c.l.b16 %v1698
        %v1831 = vunpack.c.l.b16 %v1699
        %v1832 = vunpack.c.l.b16 %v1700
        %v1833 = vunpack.c.l.b16 %v1701
        %v1834 = vunpack.c.l.b16 %v1702
        %v1835 = vunpack.c.l.b16 %v1703
        %v1836 = vunpack.c.l.b16 %v1704
        %v1837 = vunpack.c.l.b16 %v1705
        %v1838 = vpack.c.b16 %v1775, %v1774
        %v1839 = vpack.c.b16 %v1777, %v1776
        %v1840 = vpack.c.b16 %v1779, %v1778
        %v1841 = vpack.c.b16 %v1781, %v1780
        %v1842 = vpack.c.b16 %v1783, %v1782
        %v1843 = vpack.c.b16 %v1785, %v1784
        %v1844 = vpack.c.b16 %v1787, %v1786
        %v1845 = vpack.c.b16 %v1789, %v1788
        %v1846 = vpack.c.b16 %v1791, %v1790
        %v1847 = vpack.c.b16 %v1793, %v1792
        %v1848 = vpack.c.b16 %v1795, %v1794
        %v1849 = vpack.c.b16 %v1797, %v1796
        %v1850 = vpack.c.b16 %v1799, %v1798
        %v1851 = vpack.c.b16 %v1801, %v1800
        %v1852 = vpack.c.b16 %v1803, %v1802
        %v1853 = vpack.c.b16 %v1805, %v1804
        %v1854 = vpack.c.b16 %v1807, %v1806
        %v1855 = vpack.c.b16 %v1809, %v1808
        %v1856 = vpack.c.b16 %v1811, %v1810
        %v1857 = vpack.c.b16 %v1813, %v1812
        %v1858 = vpack.c.b16 %v1815, %v1814
        %v1859 = vpack.c.b16 %v1817, %v1816
        %v1860 = vpack.c.b16 %v1819, %v1818
        %v1861 = vpack.c.b16 %v1821, %v1820
        %v1862 = vpack.c.b16 %v1823, %v1822
        %v1863 = vpack.c.b16 %v1825, %v1824
        %v1864 = vpack.c.b16 %v1827, %v1826
        %v1865 = vpack.c.b16 %v1829, %v1828
        %v1866 = vpack.c.b16 %v1831, %v1830
        %v1867 = vpack.c.b16 %v1833, %v1832
        %v1868 = vpack.c.b16 %v1835, %v1834
        %v1869 = vpack.c.b16 %v1837, %v1836
        %1902 = vmatpush.bf16.msra.mxu0 %v1845
        %1903 = vmatpush.bf16.msra.mxu0 %v1844
        %1904 = vmatpush.bf16.msra.mxu0 %v1843
        %1905 = vmatpush.bf16.msra.mxu0 %v1842
        %1906 = vmatpush.bf16.msra.mxu0 %v1841
        %1907 = vmatpush.bf16.msra.mxu0 %v1840
        %1908 = vmatpush.bf16.msra.mxu0 %v1839
        %1909 = vmatpush.bf16.msra.mxu0 %v1838
        %1910 = vmatmul.bf16.gmra.mxu0 %v1638
        %v1911 = vpop.f32.mrf.mxu0
        %v1912 = vadd.f32 %v1708, %v1911
        %v1913 = vpop.f32.mrf.mxu0
        %1914 = vdwg.mxu0
        %1915 = vmatpush.bf16.msra.mxu0 %v1853
        %1916 = vmatpush.bf16.msra.mxu0 %v1852
        %1917 = vmatpush.bf16.msra.mxu0 %v1851
        %1918 = vmatpush.bf16.msra.mxu0 %v1850
        %1919 = vmatpush.bf16.msra.mxu0 %v1849
        %1920 = vmatpush.bf16.msra.mxu0 %v1848
        %1921 = vmatpush.bf16.msra.mxu0 %v1847
        %1922 = vmatpush.bf16.msra.mxu0 %v1846
        %1923 = vmatmul.bf16.gmra.mxu0 %v1639
        %v1924 = vpop.f32.mrf.mxu0
        %v1925 = vadd.f32 %v1912, %v1924
        %v1926 = vpop.f32.mrf.mxu0
        %1927 = vdwg.mxu0
        %1928 = vmatpush.bf16.msra.mxu0 %v1861
        %1929 = vmatpush.bf16.msra.mxu0 %v1860
        %1930 = vmatpush.bf16.msra.mxu0 %v1859
        %1931 = vmatpush.bf16.msra.mxu0 %v1858
        %1932 = vmatpush.bf16.msra.mxu0 %v1857
        %1933 = vmatpush.bf16.msra.mxu0 %v1856
        %1934 = vmatpush.bf16.msra.mxu0 %v1855
        %1935 = vmatpush.bf16.msra.mxu0 %v1854
        %1936 = vmatmul.bf16.gmra.mxu0 %v1640
        %v1937 = vpop.f32.mrf.mxu0
        %v1938 = vadd.f32 %v1925, %v1937
        %v1939 = vpop.f32.mrf.mxu0
        %1940 = vdwg.mxu0
        %1941 = vmatpush.bf16.msra.mxu0 %v1869
        %1942 = vmatpush.bf16.msra.mxu0 %v1868
        %1943 = vmatpush.bf16.msra.mxu0 %v1867
        %1944 = vmatpush.bf16.msra.mxu0 %v1866
        %1945 = vmatpush.bf16.msra.mxu0 %v1865
        %1946 = vmatpush.bf16.msra.mxu0 %v1864
        %1947 = vmatpush.bf16.msra.mxu0 %v1863
        %1948 = vmatpush.bf16.msra.mxu0 %v1862
        %1949 = vmatmul.bf16.gmra.mxu0 %v1641
        %v1950 = vpop.f32.mrf.mxu0
        %v1951 = vadd.f32 %v1938, %v1950
        %v1952 = vpop.f32.mrf.mxu0
        %1953 = vdwg.mxu0
        %v1954 = vadd.f32 %v1222, %v1951
        %v1955 = vld [vmem:[%s11] sm:$0x1]
        %v1956 = vld [vmem:[%s12] sm:$0x1]
        %1957 = vadd.xlane.f32.xlu0 %v1954
        %v1958 = vpop.xlane.xlu0 %1957
        %v1959 = vmul.f32 %v1954, %v1954
        %1960 = vadd.xlane.f32.xlu0 %v1959
        %v1961 = vpop.xlane.xlu0 %1960
        %v1962 = vmul.f32 %v1958, 0.0078125
        %v1963 = vmul.f32 %v1961, 0.0078125
        %v1964 = vmul.f32 %v1962, %v1962
        %v1965 = vsub.f32 %v1963, %v1964
        %v1966 = vsub.f32 %v1954, %v1962
        %v1967 = vadd.f32 %v1965, 1e-05
        %v1968 = vrsqrt.pop %v1967
        %v1969 = vmul.f32 %v1968, %v1967
        %v1970 = vmul.f32 %v1969, %v1968
        %v1971 = vmul.f32 0.5, %v1970
        %v1972 = vsub.f32 1.5, %v1971
        %v1973 = vmul.f32 %v1968, %v1972
        %vm1974 = vweird.f32 %v1967
        %vm1975 = vweird.f32 %v1968
        %vm1976 = vmor %vm1974, %vm1975
        %v1977 = vsel %vm1976, %v1968, %v1973
        %v1978 = vmul.f32 %v1966, %v1977
        %v1980 = vperm.slane %v1955, 0
        %v1982 = vmul.f32 %v1978, %v1980
        %v1984 = vperm.slane %v1956, 0
        %v1986 = vadd.f32 %v1982, %v1984
        %1987 = vst [vmem:[%s590] sm:$0xff] %v1986
        %1988 = vst [vmem:[%s597] sm:$0xff] %v1951
        %s1989 = sand.u32 %s338, 1
        %s1990 = scalar_lea.sflag [#allocation6], %s1989
        %s1991 = sand.u32 %s338, 1
        %s1992 = smul.addr %s1991, 8
        %s1993 = scalar_lea.vmem [#allocation15], %s1992
        %s1994 = sand.u32 %s366, 1
        %s1995 = scalar_lea.sflag [#allocation17], %s1994
        %s1996 = sand.u32 %s366, 1
        %s1997 = smul.addr %s1996, 8
        %s1998 = scalar_lea.vmem [#allocation16], %s1997
        // Predicated region
        $region101: #{tpu_custom_call.1} parent=71 // pred_check
          %p1999 = pneg %p348
        $region102: #{tpu_custom_call.1} parent=71 // pred_check_branch
          %2001 = sbr.rel (%p1999) target = $region104
        $region103: #{tpu_custom_call.1} parent=71 // pred_region
          %2003 = vsyncadd %s1990, 0
          %s2004 = smul.addr %s42, 2
          %s2005 = sadd.s32 %s43, %s2004
          %s2006 = smul.addr %s2005, 8
          %s2007 = scalar_lea.hbm %s13, %s2006
          %s2009 = sshll.u32 %s1993, 4
          %s2010 = int_to_ptr.vmem [resolvable:$true] %s2009
          %s2011 = sshll.u32 %s2007, 4
          %s2012 = int_to_ptr.hbm [resolvable:$true] %s2011
          %2014 = dma.vmem_to_hbm [thread:$0]  %s2010, 128, %s2012, %s1990
        $region104: #{tpu_custom_call.1} parent=71 // pred_fallthru
          _
        // Predicated region
        $region105: #{tpu_custom_call.1} parent=71 // pred_check
          %p2015 = pneg %p376
        $region106: #{tpu_custom_call.1} parent=71 // pred_check_branch
          %2017 = sbr.rel (%p2015) target = $region108
        $region107: #{tpu_custom_call.1} parent=71 // pred_region
          %2019 = vsyncadd %s1995, 0
          %s2020 = smul.addr %s42, 2
          %s2021 = sadd.s32 %s43, %s2020
          %s2022 = smul.addr %s2021, 8
          %s2023 = scalar_lea.hbm %s14, %s2022
          %s2025 = sshll.u32 %s1998, 4
          %s2026 = int_to_ptr.vmem [resolvable:$true] %s2025
          %s2027 = sshll.u32 %s2023, 4
          %s2028 = int_to_ptr.hbm [resolvable:$true] %s2027
          %2030 = dma.vmem_to_hbm [thread:$0]  %s2026, 128, %s2028, %s1995
        $region108: #{tpu_custom_call.1} parent=71 // pred_fallthru
          _
      $region72: #{tpu_custom_call.1} parent=5 // pred_fallthru
        _
      %p2031 = scmp.le.s32.totalorder 2, %s33
      // Predicated region
      $region109: #{tpu_custom_call.1} parent=5 // pred_check
        %p2032 = pneg %p2031
      $region110: #{tpu_custom_call.1} parent=5 // pred_check_branch
        %2034 = sbr.rel (%p2032) target = $region112
      $region111: #{tpu_custom_call.1} parent=5 // pred_region
        %s2035 = ssub.s32 %s33, 2
        // Predicated region
        $region113: #{tpu_custom_call.1} parent=111 // pred_check
          %p2036 = pneg %p354
        $region114: #{tpu_custom_call.1} parent=111 // pred_check_branch
          %2038 = sbr.rel (%p2036) target = $region116
        $region115: #{tpu_custom_call.1} parent=111 // pred_region
          %s2039 = sand.u32 %s339, 1
          %s2040 = scalar_lea.sflag [#allocation6], %s2039
          %s2041 = sand.u32 %s339, 1
          %s2042 = smul.addr %s2041, 8
          %s2043 = scalar_lea.vmem [#allocation15], %s2042
          %2045 = dma.done %s2040, 128
        $region116: #{tpu_custom_call.1} parent=111 // pred_fallthru
          _
        // Predicated region
        $region117: #{tpu_custom_call.1} parent=111 // pred_check
          %p2046 = pneg %p382
        $region118: #{tpu_custom_call.1} parent=111 // pred_check_branch
          %2048 = sbr.rel (%p2046) target = $region120
        $region119: #{tpu_custom_call.1} parent=111 // pred_region
          %s2049 = sand.u32 %s367, 1
          %s2050 = scalar_lea.sflag [#allocation17], %s2049
          %s2051 = sand.u32 %s367, 1
          %s2052 = smul.addr %s2051, 8
          %s2053 = scalar_lea.vmem [#allocation16], %s2052
          %2055 = dma.done %s2050, 128
        $region120: #{tpu_custom_call.1} parent=111 // pred_fallthru
          _
      $region112: #{tpu_custom_call.1} parent=5 // pred_fallthru
        _
    $region6: #{tpu_custom_call.1} parent=1 // loop_footer
      %s37 = sadd.s32 1, %s33
    $region7: #{tpu_custom_call.1} parent=1 // loop_footer_branch
      %32 = sbr.rel target = $region3
    $region8: #{tpu_custom_call.1} parent=1 // loop_exit
      _
    %2056 = vsyncpa [#allocation5], 1
    %s2057 = scalar_lea.sflag [#allocation5], 1
    %2058 = vsyncpa %s2057, 1
    %2059 = vsyncpa [#allocation8], 1
    %2060 = vsyncpa [#allocation11], 1
    %2061 = vsyncpa [#allocation14], 1
    %2062 = vsyncpa [#allocation6], 1
    %s2063 = scalar_lea.sflag [#allocation6], 1
    %2064 = vsyncpa %s2063, 1
    %2065 = vsyncpa [#allocation17], 1
    %s2066 = scalar_lea.sflag [#allocation17], 1
    %2067 = vsyncpa %s2066, 1

</llo_original>
